<compile_context>
chip_gen: v5e
topology: v5e:2x2
jax: 0.10.0
libtpu: 0.0.40
codegen_flags: <defaults>
</compile_context>

<pallas_src>
import jax
import jax.numpy as jnp
from jax import lax
from jax.experimental import pallas as pl
from jax.experimental.pallas import tpu as pltpu

# Static network dims implied by the module: fc in_features 768 = 64 * 12
L_IN = 144        # input length -> conv1(s=3,p=1): 48 -> pool: 24 -> conv2: 24 -> pool: 12
C_IN = 13
L1, L2, L3 = 48, 24, 12
C1, C2 = 32, 64
NUM_CLASSES = 10


def cnn_kernel(patches_ref, w1_ref, b1_ref, w2_ref, b2_ref, wfc_ref, bfc_ref, out_ref):
    BB = out_ref.shape[0]          # batch elements per grid step (multiple of 8)
    n_pad = out_ref.shape[1]       # lane-padded number of classes

    # ---- conv1 + ReLU, split by output-position parity (position-major layout) ----
    x = patches_ref[...]                                   # (48, BB, 39), [l, b, cin*3+k]
    x4 = x.reshape(L2, 2, BB, C_IN * 3)                    # [m, parity, b, :] = position 2m+parity
    xe = x4[:, 0].reshape(L2 * BB, C_IN * 3)               # even conv1 positions
    xo = x4[:, 1].reshape(L2 * BB, C_IN * 3)               # odd conv1 positions
    w1 = w1_ref[...]                                       # (39, 32)
    b1 = b1_ref[...]                                       # (1, 32)
    h1e = jnp.maximum(jnp.dot(xe, w1, preferred_element_type=jnp.float32) + b1, 0.0)
    h1o = jnp.maximum(jnp.dot(xo, w1, preferred_element_type=jnp.float32) + b1, 0.0)
    # MaxPool1d(2,2): pooled position m = max(conv1[2m], conv1[2m+1])
    h1p = jnp.maximum(h1e, h1o)                            # (24*BB, 32), row = m*BB + b

    # ---- zero-pad length by 1 on each side for conv2 (value concat along sublanes) ----
    zpad = jnp.zeros((BB, C1), jnp.float32)
    P = jnp.concatenate([zpad, h1p, zpad], axis=0)         # (26*BB, 32), padded pos j at rows j*BB+b
    P3 = P.reshape(L3 + 1, 2 * BB, C1)                     # (13, 2BB, 32): [i, :BB]=pos 2i, [i, BB:]=pos 2i+1
    A = P3[0:L3, 0:BB, :].reshape(L3 * BB, C1)             # padded pos 0,2,...,22
    Bv = P3[0:L3, BB:2 * BB, :].reshape(L3 * BB, C1)       # padded pos 1,3,...,23
    C = P3[1:L3 + 1, 0:BB, :].reshape(L3 * BB, C1)         # padded pos 2,4,...,24
    D = P3[1:L3 + 1, BB:2 * BB, :].reshape(L3 * BB, C1)    # padded pos 3,5,...,25

    # ---- conv2 (k=3,s=1,p=1) as one K=96 matmul per parity + ReLU; pool2 = max of parities ----
    w2 = w2_ref[...]                                       # (96, 64), row = k*32 + cin
    b2 = b2_ref[...]                                       # (1, 64)
    xe96 = jnp.concatenate([A, Bv, C], axis=-1)            # even outputs 2m   use padded pos 2m,2m+1,2m+2
    xo96 = jnp.concatenate([Bv, C, D], axis=-1)            # odd outputs 2m+1 use padded pos 2m+1,2m+2,2m+3
    h2e = jnp.maximum(jnp.dot(xe96, w2, preferred_element_type=jnp.float32) + b2, 0.0)
    h2o = jnp.maximum(jnp.dot(xo96, w2, preferred_element_type=jnp.float32) + b2, 0.0)
    h2p = jnp.maximum(h2e, h2o)                            # (12*BB, 64), row = p*BB + b (pooled pos p)

    # ---- fc: 12 aligned (BB,64)@(64,n_pad) dots; weight pre-permuted for torch flatten c*12+l ----
    acc = jnp.dot(h2p[0:BB, :], wfc_ref[0], preferred_element_type=jnp.float32)
    for p in range(1, L3):
        acc = acc + jnp.dot(h2p[p * BB:(p + 1) * BB, :], wfc_ref[p],
                            preferred_element_type=jnp.float32)
    out_ref[...] = acc + bfc_ref[...]                      # (BB, n_pad)


def cnn_forward(x, W1, b1, W2, b2, Wfc, bfc, *, block_b=32):
    """x: (B, 1, 13, 144) float32, PyTorch-convention weights; returns (B, num_classes)."""
    B = x.shape[0]
    n_cls = Wfc.shape[0]
    n_pad = ((n_cls + 127) // 128) * 128                   # lane-dense output block

    # ---- parameter prep (plain-JAX glue) ----
    w1m = W1.reshape(C1, C_IN * 3).T                                  # (39, 32)
    w2r = jnp.transpose(W2, (2, 1, 0)).reshape(3 * C1, C2)            # (96, 64), row = k*32+cin
    wfc_r = jnp.transpose(Wfc.reshape(n_cls, C2, L3), (2, 1, 0))      # (12, 64, N): [l, c, n]
    wfc_p = jnp.pad(wfc_r, ((0, 0), (0, 0), (0, n_pad - n_cls)))      # (12, 64, n_pad)
    b1_2d = b1.reshape(1, C1)
    b2_2d = b2.reshape(1, C2)
    bfc_p = jnp.pad(bfc.reshape(1, n_cls), ((0, 0), (0, n_pad - n_cls)))

    # ---- input prep: im2col for the stride-3 conv1, position-major (48, B, 39) ----
    xs = x[:, 0]                                                       # (B, 13, 144)
    xp = jnp.pad(xs, ((0, 0), (0, 0), (1, 1)))                         # (B, 13, 146)
    idx = 3 * jnp.arange(L1)[:, None] + jnp.arange(3)[None, :]         # (48, 3)
    patches = xp[:, :, idx]                                            # (B, 13, 48, 3)
    patches = patches.transpose(2, 0, 1, 3).reshape(L1, B, C_IN * 3)   # (48, B, 39)

    # ---- batch blocking: BB multiple of 8; pad batch up to a multiple of BB ----
    BB = min(block_b, ((B + 7) // 8) * 8)
    BB = max(8, (BB // 8) * 8)
    Bp = ((B + BB - 1) // BB) * BB
    if Bp != B:
        patches = jnp.pad(patches, ((0, 0), (0, Bp - B), (0, 0)))

    out = pl.pallas_call(
        cnn_kernel,
        out_shape=jax.ShapeDtypeStruct((Bp, n_pad), jnp.float32),
        grid=(Bp // BB,),
        in_specs=[
            pl.BlockSpec((L1, BB, C_IN * 3), lambda i: (0, i, 0)),     # patches (batch-blocked)
            pl.BlockSpec((C_IN * 3, C1), lambda i: (0, 0)),            # w1 (39,32)
            pl.BlockSpec((1, C1), lambda i: (0, 0)),                   # b1
            pl.BlockSpec((3 * C1, C2), lambda i: (0, 0)),              # w2 (96,64)
            pl.BlockSpec((1, C2), lambda i: (0, 0)),                   # b2
            pl.BlockSpec((L3, C2, n_pad), lambda i: (0, 0, 0)),        # wfc (12,64,n_pad)
            pl.BlockSpec((1, n_pad), lambda i: (0, 0)),                # bfc
        ],
        out_specs=pl.BlockSpec((BB, n_pad), lambda i: (i, 0)),
        compiler_params=pltpu.CompilerParams(dimension_semantics=("parallel",)),
    )(patches, w1m, b1_2d, w2r, b2_2d, wfc_p, bfc_p)
    return out[:B, :n_cls]


def reference_forward(x, W1, b1, W2, b2, Wfc, bfc):
    """Pure-JAX (XLA) reference matching PyTorch semantics."""
    xs = x[:, 0]                                                       # (B, 13, L)
    y = lax.conv_general_dilated(xs, W1, window_strides=(3,), padding=[(1, 1)],
                                 dimension_numbers=('NCH', 'OIH', 'NCH'))
    y = jnp.maximum(y + b1[None, :, None], 0.0)
    y = lax.reduce_window(y, -jnp.inf, lax.max, (1, 1, 2), (1, 1, 2), 'VALID')
    y = lax.conv_general_dilated(y, W2, window_strides=(1,), padding=[(1, 1)],
                                 dimension_numbers=('NCH', 'OIH', 'NCH'))
    y = jnp.maximum(y + b2[None, :, None], 0.0)
    y = lax.reduce_window(y, -jnp.inf, lax.max, (1, 1, 2), (1, 1, 2), 'VALID')
    y = y.reshape(y.shape[0], -1)                                      # (B, 768), c*12+l order
    return y @ Wfc.T + bfc[None, :]


if __name__ == "__main__":
    B = 2
    key = jax.random.PRNGKey(0)
    kx, k1, k2, k3, k4, k5, k6 = jax.random.split(key, 7)

    x = jax.random.normal(kx, (B, 1, C_IN, L_IN), jnp.float32)

    # PyTorch-convention parameters (deterministic synthetic init)
    W1 = jax.random.normal(k1, (C1, C_IN, 3), jnp.float32) * 0.1   # Conv1d(13,32,3,stride=3,pad=1)
    b1 = jax.random.normal(k2, (C1,), jnp.float32) * 0.1
    W2 = jax.random.normal(k3, (C2, C1, 3), jnp.float32) * 0.1     # Conv1d(32,64,3,stride=1,pad=1)
    b2 = jax.random.normal(k4, (C2,), jnp.float32) * 0.1
    Wfc = jax.random.normal(k5, (NUM_CLASSES, C2 * L3), jnp.float32) * 0.05
    bfc = jax.random.normal(k6, (NUM_CLASSES,), jnp.float32) * 0.05

    out = cnn_forward(x, W1, b1, W2, b2, Wfc, bfc)
    out = jax.block_until_ready(out)

    ref = reference_forward(x, W1, b1, W2, b2, Wfc, bfc)
    assert out.shape == (B, NUM_CLASSES), out.shape
    if not jnp.allclose(out, ref, atol=1e-4, rtol=1e-4):
        raise AssertionError(f"mismatch: max abs err {jnp.max(jnp.abs(out - ref))}")

    print("KERNEL_OK")
</pallas_src>

<mosaic_0001>
module attributes {stable_mosaic.version = 11 : i64} {
  func.func @cnn_kernel(%arg0: i32, %arg1: memref<48x8x39xf32, #tpu.memory_space<vmem>>, %arg2: memref<39x32xf32, #tpu.memory_space<vmem>>, %arg3: memref<1x32xf32, #tpu.memory_space<vmem>>, %arg4: memref<96x64xf32, #tpu.memory_space<vmem>>, %arg5: memref<1x64xf32, #tpu.memory_space<vmem>>, %arg6: memref<12x64x128xf32, #tpu.memory_space<vmem>>, %arg7: memref<1x128xf32, #tpu.memory_space<vmem>>, %arg8: memref<8x128xf32, #tpu.memory_space<vmem>>) attributes {dimension_semantics = [#tpu.dimension_semantics<parallel>], iteration_bounds = array<i64: 1>, scalar_prefetch = 0 : i64, scratch_operands = 0 : i64, tpu.core_type = #tpu.core_type<tc>, window_params = [{transform_indices = @transform_0, window_bounds = array<i64: 48, 8, 39>}, {pipeline_mode = #tpu.pipeline_mode<synchronous>, transform_indices = @transform_1, window_bounds = array<i64: 39, 32>}, {pipeline_mode = #tpu.pipeline_mode<synchronous>, transform_indices = @transform_2, window_bounds = array<i64: 1, 32>}, {pipeline_mode = #tpu.pipeline_mode<synchronous>, transform_indices = @transform_3, window_bounds = array<i64: 96, 64>}, {pipeline_mode = #tpu.pipeline_mode<synchronous>, transform_indices = @transform_4, window_bounds = array<i64: 1, 64>}, {pipeline_mode = #tpu.pipeline_mode<synchronous>, transform_indices = @transform_5, window_bounds = array<i64: 12, 64, 128>}, {pipeline_mode = #tpu.pipeline_mode<synchronous>, transform_indices = @transform_6, window_bounds = array<i64: 1, 128>}, {transform_indices = @transform_7, window_bounds = array<i64: 8, 128>}]} {
    %c0 = arith.constant 0 : index
    %c0_0 = arith.constant 0 : index
    %c0_1 = arith.constant 0 : index
    %0 = vector.load %arg1[%c0, %c0_0, %c0_1] : memref<48x8x39xf32, #tpu.memory_space<vmem>>, vector<48x8x39xf32>
    %1 = vector.shape_cast %0 : vector<48x8x39xf32> to vector<24x2x8x39xf32>
    %2 = vector.extract_strided_slice %1 {offsets = [0, 0, 0, 0], sizes = [24, 1, 8, 39], strides = [1, 1, 1, 1]} : vector<24x2x8x39xf32> to vector<24x1x8x39xf32>
    %3 = vector.shape_cast %2 : vector<24x1x8x39xf32> to vector<24x8x39xf32>
    %4 = vector.shape_cast %3 : vector<24x8x39xf32> to vector<192x39xf32>
    %5 = vector.extract_strided_slice %1 {offsets = [0, 1, 0, 0], sizes = [24, 1, 8, 39], strides = [1, 1, 1, 1]} : vector<24x2x8x39xf32> to vector<24x1x8x39xf32>
    %6 = vector.shape_cast %5 : vector<24x1x8x39xf32> to vector<24x8x39xf32>
    %7 = vector.shape_cast %6 : vector<24x8x39xf32> to vector<192x39xf32>
    %c0_2 = arith.constant 0 : index
    %c0_3 = arith.constant 0 : index
    %8 = vector.load %arg2[%c0_2, %c0_3] : memref<39x32xf32, #tpu.memory_space<vmem>>, vector<39x32xf32>
    %c0_4 = arith.constant 0 : index
    %c0_5 = arith.constant 0 : index
    %9 = vector.load %arg3[%c0_4, %c0_5] : memref<1x32xf32, #tpu.memory_space<vmem>>, vector<1x32xf32>
    %cst = arith.constant dense<0.000000e+00> : vector<192x32xf32>
    %10 = tpu.matmul %4, %8, %cst {dimension_numbers = #tpu.dot_dimension_numbers<[1], [0], [0], [1], [0, 0, 1, 1], [], []>} : vector<192x39xf32>, vector<39x32xf32>, vector<192x32xf32> -> vector<192x32xf32>
    %11 = vector.broadcast %9 : vector<1x32xf32> to vector<192x32xf32>
    %12 = arith.addf %10, %11 : vector<192x32xf32>
    %cst_6 = arith.constant 0.000000e+00 : f32
    %13 = vector.broadcast %cst_6 : f32 to vector<192x32xf32>
    %14 = arith.maximumf %12, %13 : vector<192x32xf32>
    %cst_7 = arith.constant dense<0.000000e+00> : vector<192x32xf32>
    %15 = tpu.matmul %7, %8, %cst_7 {dimension_numbers = #tpu.dot_dimension_numbers<[1], [0], [0], [1], [0, 0, 1, 1], [], []>} : vector<192x39xf32>, vector<39x32xf32>, vector<192x32xf32> -> vector<192x32xf32>
    %16 = vector.broadcast %9 : vector<1x32xf32> to vector<192x32xf32>
    %17 = arith.addf %15, %16 : vector<192x32xf32>
    %cst_8 = arith.constant 0.000000e+00 : f32
    %18 = vector.broadcast %cst_8 : f32 to vector<192x32xf32>
    %19 = arith.maximumf %17, %18 : vector<192x32xf32>
    %20 = arith.maximumf %14, %19 : vector<192x32xf32>
    %cst_9 = arith.constant 0.000000e+00 : f32
    %21 = vector.broadcast %cst_9 : f32 to vector<8x32xf32>
    %22 = tpu.concatenate %21, %20, %21 in 0 : vector<8x32xf32>, vector<192x32xf32>, vector<8x32xf32> -> vector<208x32xf32>
    %23 = vector.shape_cast %22 : vector<208x32xf32> to vector<13x16x32xf32>
    %24 = vector.extract_strided_slice %23 {offsets = [0, 0, 0], sizes = [12, 8, 32], strides = [1, 1, 1]} : vector<13x16x32xf32> to vector<12x8x32xf32>
    %25 = vector.shape_cast %24 : vector<12x8x32xf32> to vector<96x32xf32>
    %26 = vector.extract_strided_slice %23 {offsets = [0, 8, 0], sizes = [12, 8, 32], strides = [1, 1, 1]} : vector<13x16x32xf32> to vector<12x8x32xf32>
    %27 = vector.shape_cast %26 : vector<12x8x32xf32> to vector<96x32xf32>
    %28 = vector.extract_strided_slice %23 {offsets = [1, 0, 0], sizes = [12, 8, 32], strides = [1, 1, 1]} : vector<13x16x32xf32> to vector<12x8x32xf32>
    %29 = vector.shape_cast %28 : vector<12x8x32xf32> to vector<96x32xf32>
    %30 = vector.extract_strided_slice %23 {offsets = [1, 8, 0], sizes = [12, 8, 32], strides = [1, 1, 1]} : vector<13x16x32xf32> to vector<12x8x32xf32>
    %31 = vector.shape_cast %30 : vector<12x8x32xf32> to vector<96x32xf32>
    %c0_10 = arith.constant 0 : index
    %c0_11 = arith.constant 0 : index
    %32 = vector.load %arg4[%c0_10, %c0_11] : memref<96x64xf32, #tpu.memory_space<vmem>>, vector<96x64xf32>
    %c0_12 = arith.constant 0 : index
    %c0_13 = arith.constant 0 : index
    %33 = vector.load %arg5[%c0_12, %c0_13] : memref<1x64xf32, #tpu.memory_space<vmem>>, vector<1x64xf32>
    %34 = tpu.concatenate %25, %27, %29 in 1 : vector<96x32xf32>, vector<96x32xf32>, vector<96x32xf32> -> vector<96x96xf32>
    %35 = tpu.concatenate %27, %29, %31 in 1 : vector<96x32xf32>, vector<96x32xf32>, vector<96x32xf32> -> vector<96x96xf32>
    %cst_14 = arith.constant dense<0.000000e+00> : vector<96x64xf32>
    %36 = tpu.matmul %34, %32, %cst_14 {dimension_numbers = #tpu.dot_dimension_numbers<[1], [0], [0], [1], [0, 0, 1, 1], [], []>} : vector<96x96xf32>, vector<96x64xf32>, vector<96x64xf32> -> vector<96x64xf32>
    %37 = vector.broadcast %33 : vector<1x64xf32> to vector<96x64xf32>
    %38 = arith.addf %36, %37 : vector<96x64xf32>
    %cst_15 = arith.constant 0.000000e+00 : f32
    %39 = vector.broadcast %cst_15 : f32 to vector<96x64xf32>
    %40 = arith.maximumf %38, %39 : vector<96x64xf32>
    %cst_16 = arith.constant dense<0.000000e+00> : vector<96x64xf32>
    %41 = tpu.matmul %35, %32, %cst_16 {dimension_numbers = #tpu.dot_dimension_numbers<[1], [0], [0], [1], [0, 0, 1, 1], [], []>} : vector<96x96xf32>, vector<96x64xf32>, vector<96x64xf32> -> vector<96x64xf32>
    %42 = vector.broadcast %33 : vector<1x64xf32> to vector<96x64xf32>
    %43 = arith.addf %41, %42 : vector<96x64xf32>
    %cst_17 = arith.constant 0.000000e+00 : f32
    %44 = vector.broadcast %cst_17 : f32 to vector<96x64xf32>
    %45 = arith.maximumf %43, %44 : vector<96x64xf32>
    %46 = arith.maximumf %40, %45 : vector<96x64xf32>
    %47 = vector.extract_strided_slice %46 {offsets = [0, 0], sizes = [8, 64], strides = [1, 1]} : vector<96x64xf32> to vector<8x64xf32>
    %c0_18 = arith.constant 0 : index
    %c0_19 = arith.constant 0 : index
    %c0_20 = arith.constant 0 : index
    %48 = vector.load %arg6[%c0_18, %c0_19, %c0_20] : memref<12x64x128xf32, #tpu.memory_space<vmem>>, vector<1x64x128xf32>
    %49 = vector.shape_cast %48 : vector<1x64x128xf32> to vector<64x128xf32>
    %cst_21 = arith.constant dense<0.000000e+00> : vector<8x128xf32>
    %50 = tpu.matmul %47, %49, %cst_21 {dimension_numbers = #tpu.dot_dimension_numbers<[1], [0], [0], [1], [0, 0, 1, 1], [], []>} : vector<8x64xf32>, vector<64x128xf32>, vector<8x128xf32> -> vector<8x128xf32>
    %51 = vector.extract_strided_slice %46 {offsets = [8, 0], sizes = [8, 64], strides = [1, 1]} : vector<96x64xf32> to vector<8x64xf32>
    %c1 = arith.constant 1 : index
    %c0_22 = arith.constant 0 : index
    %c0_23 = arith.constant 0 : index
    %52 = vector.load %arg6[%c1, %c0_22, %c0_23] : memref<12x64x128xf32, #tpu.memory_space<vmem>>, vector<1x64x128xf32>
    %53 = vector.shape_cast %52 : vector<1x64x128xf32> to vector<64x128xf32>
    %cst_24 = arith.constant dense<0.000000e+00> : vector<8x128xf32>
    %54 = tpu.matmul %51, %53, %cst_24 {dimension_numbers = #tpu.dot_dimension_numbers<[1], [0], [0], [1], [0, 0, 1, 1], [], []>} : vector<8x64xf32>, vector<64x128xf32>, vector<8x128xf32> -> vector<8x128xf32>
    %55 = arith.addf %50, %54 : vector<8x128xf32>
    %56 = vector.extract_strided_slice %46 {offsets = [16, 0], sizes = [8, 64], strides = [1, 1]} : vector<96x64xf32> to vector<8x64xf32>
    %c2 = arith.constant 2 : index
    %c0_25 = arith.constant 0 : index
    %c0_26 = arith.constant 0 : index
    %57 = vector.load %arg6[%c2, %c0_25, %c0_26] : memref<12x64x128xf32, #tpu.memory_space<vmem>>, vector<1x64x128xf32>
    %58 = vector.shape_cast %57 : vector<1x64x128xf32> to vector<64x128xf32>
    %cst_27 = arith.constant dense<0.000000e+00> : vector<8x128xf32>
    %59 = tpu.matmul %56, %58, %cst_27 {dimension_numbers = #tpu.dot_dimension_numbers<[1], [0], [0], [1], [0, 0, 1, 1], [], []>} : vector<8x64xf32>, vector<64x128xf32>, vector<8x128xf32> -> vector<8x128xf32>
    %60 = arith.addf %55, %59 : vector<8x128xf32>
    %61 = vector.extract_strided_slice %46 {offsets = [24, 0], sizes = [8, 64], strides = [1, 1]} : vector<96x64xf32> to vector<8x64xf32>
    %c3 = arith.constant 3 : index
    %c0_28 = arith.constant 0 : index
    %c0_29 = arith.constant 0 : index
    %62 = vector.load %arg6[%c3, %c0_28, %c0_29] : memref<12x64x128xf32, #tpu.memory_space<vmem>>, vector<1x64x128xf32>
    %63 = vector.shape_cast %62 : vector<1x64x128xf32> to vector<64x128xf32>
    %cst_30 = arith.constant dense<0.000000e+00> : vector<8x128xf32>
    %64 = tpu.matmul %61, %63, %cst_30 {dimension_numbers = #tpu.dot_dimension_numbers<[1], [0], [0], [1], [0, 0, 1, 1], [], []>} : vector<8x64xf32>, vector<64x128xf32>, vector<8x128xf32> -> vector<8x128xf32>
    %65 = arith.addf %60, %64 : vector<8x128xf32>
    %66 = vector.extract_strided_slice %46 {offsets = [32, 0], sizes = [8, 64], strides = [1, 1]} : vector<96x64xf32> to vector<8x64xf32>
    %c4 = arith.constant 4 : index
    %c0_31 = arith.constant 0 : index
    %c0_32 = arith.constant 0 : index
    %67 = vector.load %arg6[%c4, %c0_31, %c0_32] : memref<12x64x128xf32, #tpu.memory_space<vmem>>, vector<1x64x128xf32>
    %68 = vector.shape_cast %67 : vector<1x64x128xf32> to vector<64x128xf32>
    %cst_33 = arith.constant dense<0.000000e+00> : vector<8x128xf32>
    %69 = tpu.matmul %66, %68, %cst_33 {dimension_numbers = #tpu.dot_dimension_numbers<[1], [0], [0], [1], [0, 0, 1, 1], [], []>} : vector<8x64xf32>, vector<64x128xf32>, vector<8x128xf32> -> vector<8x128xf32>
    %70 = arith.addf %65, %69 : vector<8x128xf32>
    %71 = vector.extract_strided_slice %46 {offsets = [40, 0], sizes = [8, 64], strides = [1, 1]} : vector<96x64xf32> to vector<8x64xf32>
    %c5 = arith.constant 5 : index
    %c0_34 = arith.constant 0 : index
    %c0_35 = arith.constant 0 : index
    %72 = vector.load %arg6[%c5, %c0_34, %c0_35] : memref<12x64x128xf32, #tpu.memory_space<vmem>>, vector<1x64x128xf32>
    %73 = vector.shape_cast %72 : vector<1x64x128xf32> to vector<64x128xf32>
    %cst_36 = arith.constant dense<0.000000e+00> : vector<8x128xf32>
    %74 = tpu.matmul %71, %73, %cst_36 {dimension_numbers = #tpu.dot_dimension_numbers<[1], [0], [0], [1], [0, 0, 1, 1], [], []>} : vector<8x64xf32>, vector<64x128xf32>, vector<8x128xf32> -> vector<8x128xf32>
    %75 = arith.addf %70, %74 : vector<8x128xf32>
    %76 = vector.extract_strided_slice %46 {offsets = [48, 0], sizes = [8, 64], strides = [1, 1]} : vector<96x64xf32> to vector<8x64xf32>
    %c6 = arith.constant 6 : index
    %c0_37 = arith.constant 0 : index
    %c0_38 = arith.constant 0 : index
    %77 = vector.load %arg6[%c6, %c0_37, %c0_38] : memref<12x64x128xf32, #tpu.memory_space<vmem>>, vector<1x64x128xf32>
    %78 = vector.shape_cast %77 : vector<1x64x128xf32> to vector<64x128xf32>
    %cst_39 = arith.constant dense<0.000000e+00> : vector<8x128xf32>
    %79 = tpu.matmul %76, %78, %cst_39 {dimension_numbers = #tpu.dot_dimension_numbers<[1], [0], [0], [1], [0, 0, 1, 1], [], []>} : vector<8x64xf32>, vector<64x128xf32>, vector<8x128xf32> -> vector<8x128xf32>
    %80 = arith.addf %75, %79 : vector<8x128xf32>
    %81 = vector.extract_strided_slice %46 {offsets = [56, 0], sizes = [8, 64], strides = [1, 1]} : vector<96x64xf32> to vector<8x64xf32>
    %c7 = arith.constant 7 : index
    %c0_40 = arith.constant 0 : index
    %c0_41 = arith.constant 0 : index
    %82 = vector.load %arg6[%c7, %c0_40, %c0_41] : memref<12x64x128xf32, #tpu.memory_space<vmem>>, vector<1x64x128xf32>
    %83 = vector.shape_cast %82 : vector<1x64x128xf32> to vector<64x128xf32>
    %cst_42 = arith.constant dense<0.000000e+00> : vector<8x128xf32>
    %84 = tpu.matmul %81, %83, %cst_42 {dimension_numbers = #tpu.dot_dimension_numbers<[1], [0], [0], [1], [0, 0, 1, 1], [], []>} : vector<8x64xf32>, vector<64x128xf32>, vector<8x128xf32> -> vector<8x128xf32>
    %85 = arith.addf %80, %84 : vector<8x128xf32>
    %86 = vector.extract_strided_slice %46 {offsets = [64, 0], sizes = [8, 64], strides = [1, 1]} : vector<96x64xf32> to vector<8x64xf32>
    %c8 = arith.constant 8 : index
    %c0_43 = arith.constant 0 : index
    %c0_44 = arith.constant 0 : index
    %87 = vector.load %arg6[%c8, %c0_43, %c0_44] : memref<12x64x128xf32, #tpu.memory_space<vmem>>, vector<1x64x128xf32>
    %88 = vector.shape_cast %87 : vector<1x64x128xf32> to vector<64x128xf32>
    %cst_45 = arith.constant dense<0.000000e+00> : vector<8x128xf32>
    %89 = tpu.matmul %86, %88, %cst_45 {dimension_numbers = #tpu.dot_dimension_numbers<[1], [0], [0], [1], [0, 0, 1, 1], [], []>} : vector<8x64xf32>, vector<64x128xf32>, vector<8x128xf32> -> vector<8x128xf32>
    %90 = arith.addf %85, %89 : vector<8x128xf32>
    %91 = vector.extract_strided_slice %46 {offsets = [72, 0], sizes = [8, 64], strides = [1, 1]} : vector<96x64xf32> to vector<8x64xf32>
    %c9 = arith.constant 9 : index
    %c0_46 = arith.constant 0 : index
    %c0_47 = arith.constant 0 : index
    %92 = vector.load %arg6[%c9, %c0_46, %c0_47] : memref<12x64x128xf32, #tpu.memory_space<vmem>>, vector<1x64x128xf32>
    %93 = vector.shape_cast %92 : vector<1x64x128xf32> to vector<64x128xf32>
    %cst_48 = arith.constant dense<0.000000e+00> : vector<8x128xf32>
    %94 = tpu.matmul %91, %93, %cst_48 {dimension_numbers = #tpu.dot_dimension_numbers<[1], [0], [0], [1], [0, 0, 1, 1], [], []>} : vector<8x64xf32>, vector<64x128xf32>, vector<8x128xf32> -> vector<8x128xf32>
    %95 = arith.addf %90, %94 : vector<8x128xf32>
    %96 = vector.extract_strided_slice %46 {offsets = [80, 0], sizes = [8, 64], strides = [1, 1]} : vector<96x64xf32> to vector<8x64xf32>
    %c10 = arith.constant 10 : index
    %c0_49 = arith.constant 0 : index
    %c0_50 = arith.constant 0 : index
    %97 = vector.load %arg6[%c10, %c0_49, %c0_50] : memref<12x64x128xf32, #tpu.memory_space<vmem>>, vector<1x64x128xf32>
    %98 = vector.shape_cast %97 : vector<1x64x128xf32> to vector<64x128xf32>
    %cst_51 = arith.constant dense<0.000000e+00> : vector<8x128xf32>
    %99 = tpu.matmul %96, %98, %cst_51 {dimension_numbers = #tpu.dot_dimension_numbers<[1], [0], [0], [1], [0, 0, 1, 1], [], []>} : vector<8x64xf32>, vector<64x128xf32>, vector<8x128xf32> -> vector<8x128xf32>
    %100 = arith.addf %95, %99 : vector<8x128xf32>
    %101 = vector.extract_strided_slice %46 {offsets = [88, 0], sizes = [8, 64], strides = [1, 1]} : vector<96x64xf32> to vector<8x64xf32>
    %c11 = arith.constant 11 : index
    %c0_52 = arith.constant 0 : index
    %c0_53 = arith.constant 0 : index
    %102 = vector.load %arg6[%c11, %c0_52, %c0_53] : memref<12x64x128xf32, #tpu.memory_space<vmem>>, vector<1x64x128xf32>
    %103 = vector.shape_cast %102 : vector<1x64x128xf32> to vector<64x128xf32>
    %cst_54 = arith.constant dense<0.000000e+00> : vector<8x128xf32>
    %104 = tpu.matmul %101, %103, %cst_54 {dimension_numbers = #tpu.dot_dimension_numbers<[1], [0], [0], [1], [0, 0, 1, 1], [], []>} : vector<8x64xf32>, vector<64x128xf32>, vector<8x128xf32> -> vector<8x128xf32>
    %105 = arith.addf %100, %104 : vector<8x128xf32>
    %c0_55 = arith.constant 0 : index
    %c0_56 = arith.constant 0 : index
    %106 = vector.load %arg7[%c0_55, %c0_56] : memref<1x128xf32, #tpu.memory_space<vmem>>, vector<1x128xf32>
    %107 = vector.broadcast %106 : vector<1x128xf32> to vector<8x128xf32>
    %108 = arith.addf %105, %107 : vector<8x128xf32>
    %c0_57 = arith.constant 0 : index
    %c0_58 = arith.constant 0 : index
    %109 = vector.load %arg8[%c0_57, %c0_58] : memref<8x128xf32, #tpu.memory_space<vmem>>, vector<8x128xf32>
    tpu.vector_store %arg8[%c0_57, %c0_58], %108 {strides = array<i32>} : memref<8x128xf32, #tpu.memory_space<vmem>>, vector<8x128xf32>,
    return
  }
  func.func @transform_0(%arg0: i32) -> (i32, i32, i32) {
    %c0_i32 = arith.constant 0 : i32
    %c0_i32_0 = arith.constant 0 : i32
    %c0_i32_1 = arith.constant 0 : i32
    return %c0_i32, %arg0, %c0_i32_0 : i32, i32, i32
  }
  func.func @transform_1(%arg0: i32) -> (i32, i32) {
    %c0_i32 = arith.constant 0 : i32
    %c0_i32_0 = arith.constant 0 : i32
    %c0_i32_1 = arith.constant 0 : i32
    return %c0_i32, %c0_i32_0 : i32, i32
  }
  func.func @transform_2(%arg0: i32) -> (i32, i32) {
    %c0_i32 = arith.constant 0 : i32
    %c0_i32_0 = arith.constant 0 : i32
    %c0_i32_1 = arith.constant 0 : i32
    return %c0_i32, %c0_i32_0 : i32, i32
  }
  func.func @transform_3(%arg0: i32) -> (i32, i32) {
    %c0_i32 = arith.constant 0 : i32
    %c0_i32_0 = arith.constant 0 : i32
    %c0_i32_1 = arith.constant 0 : i32
    return %c0_i32, %c0_i32_0 : i32, i32
  }
  func.func @transform_4(%arg0: i32) -> (i32, i32) {
    %c0_i32 = arith.constant 0 : i32
    %c0_i32_0 = arith.constant 0 : i32
    %c0_i32_1 = arith.constant 0 : i32
    return %c0_i32, %c0_i32_0 : i32, i32
  }
  func.func @transform_5(%arg0: i32) -> (i32, i32, i32) {
    %c0_i32 = arith.constant 0 : i32
    %c0_i32_0 = arith.constant 0 : i32
    %c0_i32_1 = arith.constant 0 : i32
    %c0_i32_2 = arith.constant 0 : i32
    return %c0_i32, %c0_i32_0, %c0_i32_1 : i32, i32, i32
  }
  func.func @transform_6(%arg0: i32) -> (i32, i32) {
    %c0_i32 = arith.constant 0 : i32
    %c0_i32_0 = arith.constant 0 : i32
    %c0_i32_1 = arith.constant 0 : i32
    return %c0_i32, %c0_i32_0 : i32, i32
  }
  func.func @transform_7(%arg0: i32) -> (i32, i32) {
    %c0_i32 = arith.constant 0 : i32
    %c0_i32_0 = arith.constant 0 : i32
    return %arg0, %c0_i32 : i32, i32
  }
}

</mosaic_0001>

<llo_original>
// kernel: tpu_custom_call.1
$region0: #{tpu_custom_call.1}
  #allocation0 [shape = 'u32[]', space=smem, size = 0x4, offset = 0x4, fixed_abs, tag = 'smem constant byte address 0x4 - core index']
  #allocation1 [shape = 'u32[72,128]{1,0:T(1,128)}', space=vmem, size = 0x9000, scoped, tag = 'internal scratch']
  %s0 = inlined_call_operand.vmem [shape: f32[48,8,39], index: 0, kind: input, shape index: {}]
  %s1 = inlined_call_operand.vmem [shape: f32[39,32], index: 1, kind: input, shape index: {}]
  %s2 = inlined_call_operand.vmem [shape: f32[1,32], index: 2, kind: input, shape index: {}]
  %s3 = inlined_call_operand.vmem [shape: f32[96,64], index: 3, kind: input, shape index: {}]
  %s4 = inlined_call_operand.vmem [shape: f32[1,64], index: 4, kind: input, shape index: {}]
  %s5 = inlined_call_operand.vmem [shape: f32[12,64,128], index: 5, kind: input, shape index: {}]
  %s6 = inlined_call_operand.vmem [shape: f32[1,128], index: 6, kind: input, shape index: {}]
  %s7 = inlined_call_operand.hbm [shape: f32[8,128], index: 7, kind: output, shape index: {}]
  %s8 = sld [smem:[#allocation0]]
  $region38: #{tpu_custom_call.1} parent=0
    _
  %s10 = ssub.s32 1, %s8
  %s11 = scalar_select 0, %s10, %s8
  $region1: #{tpu_custom_call.1} parent=0
    #allocation2 [shape = 'u8[4096]{0}', space=vmem, size = 0x1000, scoped, tag = 'output window, operand 0, single buffered']
    #allocation3 [shape = 's32[1]{0}', space=sflag, size = 0x4, scoped, tag = 'scoped memory for tpu_custom_call.1']
    %12 = vsyncpa [#allocation3], 0
    // Predicated region
    $region2: #{tpu_custom_call.1} parent=1 // pred_check
      _
    $region3: #{tpu_custom_call.1} parent=1 // pred_check_branch
      %14 = sbr.rel (0) target = $region5
    $region4: #{tpu_custom_call.1} parent=1 // pred_region
      _
    $region5: #{tpu_custom_call.1} parent=1 // pred_fallthru
      _
    // Predicated region
    $region6: #{tpu_custom_call.1} parent=1 // pred_check
      _
    $region7: #{tpu_custom_call.1} parent=1 // pred_check_branch
      %16 = sbr.rel (0) target = $region9
    $region8: #{tpu_custom_call.1} parent=1 // pred_region
      _
    $region9: #{tpu_custom_call.1} parent=1 // pred_fallthru
      _
    // Predicated region
    $region10: #{tpu_custom_call.1} parent=1 // pred_check
      _
    $region11: #{tpu_custom_call.1} parent=1 // pred_check_branch
      %18 = sbr.rel (0) target = $region13
    $region12: #{tpu_custom_call.1} parent=1 // pred_region
      _
    $region13: #{tpu_custom_call.1} parent=1 // pred_fallthru
      _
    // Predicated region
    $region14: #{tpu_custom_call.1} parent=1 // pred_check
      _
    $region15: #{tpu_custom_call.1} parent=1 // pred_check_branch
      %20 = sbr.rel (0) target = $region17
    $region16: #{tpu_custom_call.1} parent=1 // pred_region
      _
    $region17: #{tpu_custom_call.1} parent=1 // pred_fallthru
      _
    // Predicated region
    $region18: #{tpu_custom_call.1} parent=1 // pred_check
      _
    $region19: #{tpu_custom_call.1} parent=1 // pred_check_branch
      %22 = sbr.rel (0) target = $region21
    $region20: #{tpu_custom_call.1} parent=1 // pred_region
      _
    $region21: #{tpu_custom_call.1} parent=1 // pred_fallthru
      _
    // Predicated region
    $region22: #{tpu_custom_call.1} parent=1 // pred_check
      _
    $region23: #{tpu_custom_call.1} parent=1 // pred_check_branch
      %24 = sbr.rel (0) target = $region25
    $region24: #{tpu_custom_call.1} parent=1 // pred_region
      _
    $region25: #{tpu_custom_call.1} parent=1 // pred_fallthru
      _
    // Predicated region
    $region26: #{tpu_custom_call.1} parent=1 // pred_check
      _
    $region27: #{tpu_custom_call.1} parent=1 // pred_check_branch
      %26 = sbr.rel (0) target = $region29
    $region28: #{tpu_custom_call.1} parent=1 // pred_region
      _
    $region29: #{tpu_custom_call.1} parent=1 // pred_fallthru
      _
    %v27 = vld [vmem:[%s0] sm:$0xff]
    %v28 = vld [vmem:[%s0 + $0x8] sm:$0xff]
    %v29 = vld [vmem:[%s0 + $0x10] sm:$0xff]
    %v30 = vld [vmem:[%s0 + $0x18] sm:$0xff]
    %v31 = vld [vmem:[%s0 + $0x20] sm:$0xff]
    %v32 = vld [vmem:[%s0 + $0x28] sm:$0xff]
    %v33 = vld [vmem:[%s0 + $0x30] sm:$0xff]
    %v34 = vld [vmem:[%s0 + $0x38] sm:$0xff]
    %v35 = vld [vmem:[%s0 + $0x40] sm:$0xff]
    %v36 = vld [vmem:[%s0 + $0x48] sm:$0xff]
    %v37 = vld [vmem:[%s0 + $0x50] sm:$0xff]
    %v38 = vld [vmem:[%s0 + $0x58] sm:$0xff]
    %v39 = vld [vmem:[%s0 + $0x60] sm:$0xff]
    %v40 = vld [vmem:[%s0 + $0x68] sm:$0xff]
    %v41 = vld [vmem:[%s0 + $0x70] sm:$0xff]
    %v42 = vld [vmem:[%s0 + $0x78] sm:$0xff]
    %v43 = vld [vmem:[%s0 + $0x80] sm:$0xff]
    %v44 = vld [vmem:[%s0 + $0x88] sm:$0xff]
    %v45 = vld [vmem:[%s0 + $0x90] sm:$0xff]
    %v46 = vld [vmem:[%s0 + $0x98] sm:$0xff]
    %v47 = vld [vmem:[%s0 + $0xa0] sm:$0xff]
    %v48 = vld [vmem:[%s0 + $0xa8] sm:$0xff]
    %v49 = vld [vmem:[%s0 + $0xb0] sm:$0xff]
    %v50 = vld [vmem:[%s0 + $0xb8] sm:$0xff]
    %v51 = vld [vmem:[%s0 + $0xc0] sm:$0xff]
    %v52 = vld [vmem:[%s0 + $0xc8] sm:$0xff]
    %v53 = vld [vmem:[%s0 + $0xd0] sm:$0xff]
    %v54 = vld [vmem:[%s0 + $0xd8] sm:$0xff]
    %v55 = vld [vmem:[%s0 + $0xe0] sm:$0xff]
    %v56 = vld [vmem:[%s0 + $0xe8] sm:$0xff]
    %v57 = vld [vmem:[%s0 + $0xf0] sm:$0xff]
    %v58 = vld [vmem:[%s0 + $0xf8] sm:$0xff]
    %v59 = vld [vmem:[%s0 + $0x100] sm:$0xff]
    %v60 = vld [vmem:[%s0 + $0x108] sm:$0xff]
    %v61 = vld [vmem:[%s0 + $0x110] sm:$0xff]
    %v62 = vld [vmem:[%s0 + $0x118] sm:$0xff]
    %v63 = vld [vmem:[%s0 + $0x120] sm:$0xff]
    %v64 = vld [vmem:[%s0 + $0x128] sm:$0xff]
    %v65 = vld [vmem:[%s0 + $0x130] sm:$0xff]
    %v66 = vld [vmem:[%s0 + $0x138] sm:$0xff]
    %v67 = vld [vmem:[%s0 + $0x140] sm:$0xff]
    %v68 = vld [vmem:[%s0 + $0x148] sm:$0xff]
    %v69 = vld [vmem:[%s0 + $0x150] sm:$0xff]
    %v70 = vld [vmem:[%s0 + $0x158] sm:$0xff]
    %v71 = vld [vmem:[%s0 + $0x160] sm:$0xff]
    %v72 = vld [vmem:[%s0 + $0x168] sm:$0xff]
    %v73 = vld [vmem:[%s0 + $0x170] sm:$0xff]
    %v74 = vld [vmem:[%s0 + $0x178] sm:$0xff]
    %v75 = vld [vmem:[%s1] sm:$0xff]
    %v76 = vld [vmem:[%s1 + $0x8] sm:$0xff]
    %v77 = vld [vmem:[%s1 + $0x10] sm:$0xff]
    %v78 = vld [vmem:[%s1 + $0x18] sm:$0xff]
    %v79 = vld [vmem:[%s1 + $0x20] sm:$0x7f]
    %v80 = vld [vmem:[%s2] sm:$0x1]
    %v82 = vperm.slane %v80, 0
    %vm84 = vcmask 318464
    %v86 = vsel %vm84, %v27, 0
    %v89 = vsel %vm84, %v29, 0
    %v92 = vsel %vm84, %v31, 0
    %v95 = vsel %vm84, %v33, 0
    %v98 = vsel %vm84, %v35, 0
    %v101 = vsel %vm84, %v37, 0
    %v104 = vsel %vm84, %v39, 0
    %v107 = vsel %vm84, %v41, 0
    %v110 = vsel %vm84, %v43, 0
    %v113 = vsel %vm84, %v45, 0
    %v116 = vsel %vm84, %v47, 0
    %v119 = vsel %vm84, %v49, 0
    %v122 = vsel %vm84, %v51, 0
    %v125 = vsel %vm84, %v53, 0
    %v128 = vsel %vm84, %v55, 0
    %v131 = vsel %vm84, %v57, 0
    %v134 = vsel %vm84, %v59, 0
    %v137 = vsel %vm84, %v61, 0
    %v140 = vsel %vm84, %v63, 0
    %v143 = vsel %vm84, %v65, 0
    %v146 = vsel %vm84, %v67, 0
    %v149 = vsel %vm84, %v69, 0
    %v152 = vsel %vm84, %v71, 0
    %v155 = vsel %vm84, %v73, 0
    %vm157 = vcmask 1046528
    %v159 = vsel %vm157, %v79, 0
    %161 = vmatpush.msra.mxu0 0.0
    %162 = vmatpush.msra.mxu0 0.0
    %163 = vmatpush.msra.mxu0 0.0
    %164 = vmatpush.msra.mxu0 0.0
    %165 = vmatpush.msra.mxu0 0.0
    %166 = vmatpush.msra.mxu0 0.0
    %167 = vmatpush.msra.mxu0 0.0
    %168 = vmatpush.msra.mxu0 0.0
    %169 = vmatpush.msra.mxu0 0.0
    %170 = vmatpush.msra.mxu0 0.0
    %171 = vmatpush.msra.mxu0 0.0
    %172 = vmatpush.msra.mxu0 %v159
    %173 = vmatpush.msra.mxu0 %v78
    %174 = vmatpush.msra.mxu0 %v77
    %175 = vmatpush.msra.mxu0 %v76
    %176 = vmatpush.msra.mxu0 %v75
    %177 = vmatmul.f32.gmra.mxu0 %v86
    %v178 = vpop.f32.mrf.mxu0
    %v179 = vadd.f32 %v82, %v178
    %180 = vmatmul.f32.gmra.mxu0 %v89
    %v181 = vpop.f32.mrf.mxu0
    %v182 = vadd.f32 %v82, %v181
    %183 = vmatmul.f32.gmra.mxu0 %v92
    %v184 = vpop.f32.mrf.mxu0
    %v185 = vadd.f32 %v82, %v184
    %186 = vmatmul.f32.gmra.mxu0 %v95
    %v187 = vpop.f32.mrf.mxu0
    %v188 = vadd.f32 %v82, %v187
    %189 = vmatmul.f32.gmra.mxu0 %v98
    %v190 = vpop.f32.mrf.mxu0
    %v191 = vadd.f32 %v82, %v190
    %192 = vmatmul.f32.gmra.mxu0 %v101
    %v193 = vpop.f32.mrf.mxu0
    %v194 = vadd.f32 %v82, %v193
    %195 = vmatmul.f32.gmra.mxu0 %v104
    %v196 = vpop.f32.mrf.mxu0
    %v197 = vadd.f32 %v82, %v196
    %198 = vmatmul.f32.gmra.mxu0 %v107
    %v199 = vpop.f32.mrf.mxu0
    %v200 = vadd.f32 %v82, %v199
    %201 = vmatmul.f32.gmra.mxu0 %v110
    %v202 = vpop.f32.mrf.mxu0
    %v203 = vadd.f32 %v82, %v202
    %204 = vmatmul.f32.gmra.mxu0 %v113
    %v205 = vpop.f32.mrf.mxu0
    %v206 = vadd.f32 %v82, %v205
    %207 = vmatmul.f32.gmra.mxu0 %v116
    %v208 = vpop.f32.mrf.mxu0
    %v209 = vadd.f32 %v82, %v208
    %210 = vmatmul.f32.gmra.mxu0 %v119
    %v211 = vpop.f32.mrf.mxu0
    %v212 = vadd.f32 %v82, %v211
    %213 = vmatmul.f32.gmra.mxu0 %v122
    %v214 = vpop.f32.mrf.mxu0
    %v215 = vadd.f32 %v82, %v214
    %216 = vmatmul.f32.gmra.mxu0 %v125
    %v217 = vpop.f32.mrf.mxu0
    %v218 = vadd.f32 %v82, %v217
    %219 = vmatmul.f32.gmra.mxu0 %v128
    %v220 = vpop.f32.mrf.mxu0
    %v221 = vadd.f32 %v82, %v220
    %222 = vmatmul.f32.gmra.mxu0 %v131
    %v223 = vpop.f32.mrf.mxu0
    %v224 = vadd.f32 %v82, %v223
    %225 = vmatmul.f32.gmra.mxu0 %v134
    %v226 = vpop.f32.mrf.mxu0
    %v227 = vadd.f32 %v82, %v226
    %228 = vmatmul.f32.gmra.mxu0 %v137
    %v229 = vpop.f32.mrf.mxu0
    %v230 = vadd.f32 %v82, %v229
    %231 = vmatmul.f32.gmra.mxu0 %v140
    %v232 = vpop.f32.mrf.mxu0
    %v233 = vadd.f32 %v82, %v232
    %234 = vmatmul.f32.gmra.mxu0 %v143
    %v235 = vpop.f32.mrf.mxu0
    %v236 = vadd.f32 %v82, %v235
    %237 = vmatmul.f32.gmra.mxu0 %v146
    %v238 = vpop.f32.mrf.mxu0
    %v239 = vadd.f32 %v82, %v238
    %240 = vmatmul.f32.gmra.mxu0 %v149
    %v241 = vpop.f32.mrf.mxu0
    %v242 = vadd.f32 %v82, %v241
    %243 = vmatmul.f32.gmra.mxu0 %v152
    %v244 = vpop.f32.mrf.mxu0
    %v245 = vadd.f32 %v82, %v244
    %246 = vmatmul.f32.gmra.mxu0 %v155
    %v247 = vpop.f32.mrf.mxu0
    %v248 = vadd.f32 %v82, %v247
    %249 = vdwg.mxu0
    %v250 = vmax.f32 %v179, 0.0
    %v251 = vmax.f32 %v182, 0.0
    %v252 = vmax.f32 %v185, 0.0
    %v253 = vmax.f32 %v188, 0.0
    %v254 = vmax.f32 %v191, 0.0
    %v255 = vmax.f32 %v194, 0.0
    %v256 = vmax.f32 %v197, 0.0
    %v257 = vmax.f32 %v200, 0.0
    %v258 = vmax.f32 %v203, 0.0
    %v259 = vmax.f32 %v206, 0.0
    %v260 = vmax.f32 %v209, 0.0
    %v261 = vmax.f32 %v212, 0.0
    %v262 = vmax.f32 %v215, 0.0
    %v263 = vmax.f32 %v218, 0.0
    %v264 = vmax.f32 %v221, 0.0
    %v265 = vmax.f32 %v224, 0.0
    %v266 = vmax.f32 %v227, 0.0
    %v267 = vmax.f32 %v230, 0.0
    %v268 = vmax.f32 %v233, 0.0
    %v269 = vmax.f32 %v236, 0.0
    %v270 = vmax.f32 %v239, 0.0
    %v271 = vmax.f32 %v242, 0.0
    %v272 = vmax.f32 %v245, 0.0
    %v273 = vmax.f32 %v248, 0.0
    %v275 = vsel %vm84, %v28, 0
    %v278 = vsel %vm84, %v30, 0
    %v281 = vsel %vm84, %v32, 0
    %v284 = vsel %vm84, %v34, 0
    %v287 = vsel %vm84, %v36, 0
    %v290 = vsel %vm84, %v38, 0
    %v293 = vsel %vm84, %v40, 0
    %v296 = vsel %vm84, %v42, 0
    %v299 = vsel %vm84, %v44, 0
    %v302 = vsel %vm84, %v46, 0
    %v305 = vsel %vm84, %v48, 0
    %v308 = vsel %vm84, %v50, 0
    %v311 = vsel %vm84, %v52, 0
    %v314 = vsel %vm84, %v54, 0
    %v317 = vsel %vm84, %v56, 0
    %v320 = vsel %vm84, %v58, 0
    %v323 = vsel %vm84, %v60, 0
    %v326 = vsel %vm84, %v62, 0
    %v329 = vsel %vm84, %v64, 0
    %v332 = vsel %vm84, %v66, 0
    %v335 = vsel %vm84, %v68, 0
    %v338 = vsel %vm84, %v70, 0
    %v341 = vsel %vm84, %v72, 0
    %v344 = vsel %vm84, %v74, 0
    %346 = vmatpush.msra.mxu0 0.0
    %347 = vmatpush.msra.mxu0 0.0
    %348 = vmatpush.msra.mxu0 0.0
    %349 = vmatpush.msra.mxu0 0.0
    %350 = vmatpush.msra.mxu0 0.0
    %351 = vmatpush.msra.mxu0 0.0
    %352 = vmatpush.msra.mxu0 0.0
    %353 = vmatpush.msra.mxu0 0.0
    %354 = vmatpush.msra.mxu0 0.0
    %355 = vmatpush.msra.mxu0 0.0
    %356 = vmatpush.msra.mxu0 0.0
    %357 = vmatpush.msra.mxu0 %v159
    %358 = vmatpush.msra.mxu0 %v78
    %359 = vmatpush.msra.mxu0 %v77
    %360 = vmatpush.msra.mxu0 %v76
    %361 = vmatpush.msra.mxu0 %v75
    %362 = vmatmul.f32.gmra.mxu0 %v275
    %v363 = vpop.f32.mrf.mxu0
    %v364 = vadd.f32 %v82, %v363
    %365 = vmatmul.f32.gmra.mxu0 %v278
    %v366 = vpop.f32.mrf.mxu0
    %v367 = vadd.f32 %v82, %v366
    %368 = vmatmul.f32.gmra.mxu0 %v281
    %v369 = vpop.f32.mrf.mxu0
    %v370 = vadd.f32 %v82, %v369
    %371 = vmatmul.f32.gmra.mxu0 %v284
    %v372 = vpop.f32.mrf.mxu0
    %v373 = vadd.f32 %v82, %v372
    %374 = vmatmul.f32.gmra.mxu0 %v287
    %v375 = vpop.f32.mrf.mxu0
    %v376 = vadd.f32 %v82, %v375
    %377 = vmatmul.f32.gmra.mxu0 %v290
    %v378 = vpop.f32.mrf.mxu0
    %v379 = vadd.f32 %v82, %v378
    %380 = vmatmul.f32.gmra.mxu0 %v293
    %v381 = vpop.f32.mrf.mxu0
    %v382 = vadd.f32 %v82, %v381
    %383 = vmatmul.f32.gmra.mxu0 %v296
    %v384 = vpop.f32.mrf.mxu0
    %v385 = vadd.f32 %v82, %v384
    %386 = vmatmul.f32.gmra.mxu0 %v299
    %v387 = vpop.f32.mrf.mxu0
    %v388 = vadd.f32 %v82, %v387
    %389 = vmatmul.f32.gmra.mxu0 %v302
    %v390 = vpop.f32.mrf.mxu0
    %v391 = vadd.f32 %v82, %v390
    %392 = vmatmul.f32.gmra.mxu0 %v305
    %v393 = vpop.f32.mrf.mxu0
    %v394 = vadd.f32 %v82, %v393
    %395 = vmatmul.f32.gmra.mxu0 %v308
    %v396 = vpop.f32.mrf.mxu0
    %v397 = vadd.f32 %v82, %v396
    %398 = vmatmul.f32.gmra.mxu0 %v311
    %v399 = vpop.f32.mrf.mxu0
    %v400 = vadd.f32 %v82, %v399
    %401 = vmatmul.f32.gmra.mxu0 %v314
    %v402 = vpop.f32.mrf.mxu0
    %v403 = vadd.f32 %v82, %v402
    %404 = vmatmul.f32.gmra.mxu0 %v317
    %v405 = vpop.f32.mrf.mxu0
    %v406 = vadd.f32 %v82, %v405
    %407 = vmatmul.f32.gmra.mxu0 %v320
    %v408 = vpop.f32.mrf.mxu0
    %v409 = vadd.f32 %v82, %v408
    %410 = vmatmul.f32.gmra.mxu0 %v323
    %v411 = vpop.f32.mrf.mxu0
    %v412 = vadd.f32 %v82, %v411
    %413 = vmatmul.f32.gmra.mxu0 %v326
    %v414 = vpop.f32.mrf.mxu0
    %v415 = vadd.f32 %v82, %v414
    %416 = vmatmul.f32.gmra.mxu0 %v329
    %v417 = vpop.f32.mrf.mxu0
    %v418 = vadd.f32 %v82, %v417
    %419 = vmatmul.f32.gmra.mxu0 %v332
    %v420 = vpop.f32.mrf.mxu0
    %v421 = vadd.f32 %v82, %v420
    %422 = vmatmul.f32.gmra.mxu0 %v335
    %v423 = vpop.f32.mrf.mxu0
    %v424 = vadd.f32 %v82, %v423
    %425 = vmatmul.f32.gmra.mxu0 %v338
    %v426 = vpop.f32.mrf.mxu0
    %v427 = vadd.f32 %v82, %v426
    %428 = vmatmul.f32.gmra.mxu0 %v341
    %v429 = vpop.f32.mrf.mxu0
    %v430 = vadd.f32 %v82, %v429
    %431 = vmatmul.f32.gmra.mxu0 %v344
    %v432 = vpop.f32.mrf.mxu0
    %v433 = vadd.f32 %v82, %v432
    %434 = vdwg.mxu0
    %v435 = vmax.f32 %v364, 0.0
    %v436 = vmax.f32 %v367, 0.0
    %v437 = vmax.f32 %v370, 0.0
    %v438 = vmax.f32 %v373, 0.0
    %v439 = vmax.f32 %v376, 0.0
    %v440 = vmax.f32 %v379, 0.0
    %v441 = vmax.f32 %v382, 0.0
    %v442 = vmax.f32 %v385, 0.0
    %v443 = vmax.f32 %v388, 0.0
    %v444 = vmax.f32 %v391, 0.0
    %v445 = vmax.f32 %v394, 0.0
    %v446 = vmax.f32 %v397, 0.0
    %v447 = vmax.f32 %v400, 0.0
    %v448 = vmax.f32 %v403, 0.0
    %v449 = vmax.f32 %v406, 0.0
    %v450 = vmax.f32 %v409, 0.0
    %v451 = vmax.f32 %v412, 0.0
    %v452 = vmax.f32 %v415, 0.0
    %v453 = vmax.f32 %v418, 0.0
    %v454 = vmax.f32 %v421, 0.0
    %v455 = vmax.f32 %v424, 0.0
    %v456 = vmax.f32 %v427, 0.0
    %v457 = vmax.f32 %v430, 0.0
    %v458 = vmax.f32 %v433, 0.0
    %v459 = vmax.f32 %v250, %v435
    %v460 = vmax.f32 %v251, %v436
    %v461 = vmax.f32 %v252, %v437
    %v462 = vmax.f32 %v253, %v438
    %v463 = vmax.f32 %v254, %v439
    %v464 = vmax.f32 %v255, %v440
    %v465 = vmax.f32 %v256, %v441
    %v466 = vmax.f32 %v257, %v442
    %v467 = vmax.f32 %v258, %v443
    %v468 = vmax.f32 %v259, %v444
    %v469 = vmax.f32 %v260, %v445
    %v470 = vmax.f32 %v261, %v446
    %v471 = vmax.f32 %v262, %v447
    %v472 = vmax.f32 %v263, %v448
    %v473 = vmax.f32 %v264, %v449
    %v474 = vmax.f32 %v265, %v450
    %v475 = vmax.f32 %v266, %v451
    %v476 = vmax.f32 %v267, %v452
    %v477 = vmax.f32 %v268, %v453
    %v478 = vmax.f32 %v269, %v454
    %v479 = vmax.f32 %v270, %v455
    %v480 = vmax.f32 %v271, %v456
    %v481 = vmax.f32 %v272, %v457
    %v482 = vmax.f32 %v273, %v458
    %v483 = vld [vmem:[%s3] sm:$0xff]
    %v484 = vld [vmem:[%s3 + $0x8] sm:$0xff]
    %v485 = vld [vmem:[%s3 + $0x10] sm:$0xff]
    %v486 = vld [vmem:[%s3 + $0x18] sm:$0xff]
    %v487 = vld [vmem:[%s3 + $0x20] sm:$0xff]
    %v488 = vld [vmem:[%s3 + $0x28] sm:$0xff]
    %v489 = vld [vmem:[%s3 + $0x30] sm:$0xff]
    %v490 = vld [vmem:[%s3 + $0x38] sm:$0xff]
    %v491 = vld [vmem:[%s3 + $0x40] sm:$0xff]
    %v492 = vld [vmem:[%s3 + $0x48] sm:$0xff]
    %v493 = vld [vmem:[%s3 + $0x50] sm:$0xff]
    %v494 = vld [vmem:[%s3 + $0x58] sm:$0xff]
    %v495 = vld [vmem:[%s4] sm:$0x1]
    %508 = vrot.lane.b32.xlu0 %v459, 32
    %v509 = vpop.permute.xlu0 %508
    %510 = vrot.lane.b32.xlu0 %v461, 32
    %v511 = vpop.permute.xlu0 %510
    %512 = vrot.lane.b32.xlu0 %v463, 32
    %v513 = vpop.permute.xlu0 %512
    %514 = vrot.lane.b32.xlu0 %v465, 32
    %v515 = vpop.permute.xlu0 %514
    %516 = vrot.lane.b32.xlu0 %v467, 32
    %v517 = vpop.permute.xlu0 %516
    %518 = vrot.lane.b32.xlu0 %v469, 32
    %v519 = vpop.permute.xlu0 %518
    %520 = vrot.lane.b32.xlu0 %v471, 32
    %v521 = vpop.permute.xlu0 %520
    %522 = vrot.lane.b32.xlu0 %v473, 32
    %v523 = vpop.permute.xlu0 %522
    %524 = vrot.lane.b32.xlu0 %v475, 32
    %v525 = vpop.permute.xlu0 %524
    %526 = vrot.lane.b32.xlu0 %v477, 32
    %v527 = vpop.permute.xlu0 %526
    %528 = vrot.lane.b32.xlu0 %v479, 32
    %v529 = vpop.permute.xlu0 %528
    %530 = vrot.lane.b32.xlu0 %v481, 32
    %v531 = vpop.permute.xlu0 %530
    %556 = vrot.lane.b32.xlu0 %v460, 64
    %v557 = vpop.permute.xlu0 %556
    %558 = vrot.lane.b32.xlu0 %v462, 64
    %v559 = vpop.permute.xlu0 %558
    %560 = vrot.lane.b32.xlu0 %v464, 64
    %v561 = vpop.permute.xlu0 %560
    %562 = vrot.lane.b32.xlu0 %v466, 64
    %v563 = vpop.permute.xlu0 %562
    %564 = vrot.lane.b32.xlu0 %v468, 64
    %v565 = vpop.permute.xlu0 %564
    %566 = vrot.lane.b32.xlu0 %v470, 64
    %v567 = vpop.permute.xlu0 %566
    %568 = vrot.lane.b32.xlu0 %v472, 64
    %v569 = vpop.permute.xlu0 %568
    %570 = vrot.lane.b32.xlu0 %v474, 64
    %v571 = vpop.permute.xlu0 %570
    %572 = vrot.lane.b32.xlu0 %v476, 64
    %v573 = vpop.permute.xlu0 %572
    %574 = vrot.lane.b32.xlu0 %v478, 64
    %v575 = vpop.permute.xlu0 %574
    %576 = vrot.lane.b32.xlu0 %v480, 64
    %v577 = vpop.permute.xlu0 %576
    %578 = vrot.lane.b32.xlu0 %v482, 64
    %v579 = vpop.permute.xlu0 %578
    %vm592 = vcmask 261120
    %v593 = vsel %vm592, 0.0, %v509
    %v594 = vsel %vm592, %v460, %v511
    %v595 = vsel %vm592, %v462, %v513
    %v596 = vsel %vm592, %v464, %v515
    %v597 = vsel %vm592, %v466, %v517
    %v598 = vsel %vm592, %v468, %v519
    %v599 = vsel %vm592, %v470, %v521
    %v600 = vsel %vm592, %v472, %v523
    %v601 = vsel %vm592, %v474, %v525
    %v602 = vsel %vm592, %v476, %v527
    %v603 = vsel %vm592, %v478, %v529
    %v604 = vsel %vm592, %v480, %v531
    %vm605 = vcmask 523264
    %v606 = vsel %vm605, %v593, %v557
    %v607 = vsel %vm605, %v594, %v559
    %v608 = vsel %vm605, %v595, %v561
    %v609 = vsel %vm605, %v596, %v563
    %v610 = vsel %vm605, %v597, %v565
    %v611 = vsel %vm605, %v598, %v567
    %v612 = vsel %vm605, %v599, %v569
    %v613 = vsel %vm605, %v600, %v571
    %v614 = vsel %vm605, %v601, %v573
    %v615 = vsel %vm605, %v602, %v575
    %v616 = vsel %vm605, %v603, %v577
    %v617 = vsel %vm605, %v604, %v579
    %618 = vrot.lane.b32.xlu0 %v460, 32
    %v619 = vpop.permute.xlu0 %618
    %620 = vrot.lane.b32.xlu0 %v462, 32
    %v621 = vpop.permute.xlu0 %620
    %622 = vrot.lane.b32.xlu0 %v464, 32
    %v623 = vpop.permute.xlu0 %622
    %624 = vrot.lane.b32.xlu0 %v466, 32
    %v625 = vpop.permute.xlu0 %624
    %626 = vrot.lane.b32.xlu0 %v468, 32
    %v627 = vpop.permute.xlu0 %626
    %628 = vrot.lane.b32.xlu0 %v470, 32
    %v629 = vpop.permute.xlu0 %628
    %630 = vrot.lane.b32.xlu0 %v472, 32
    %v631 = vpop.permute.xlu0 %630
    %632 = vrot.lane.b32.xlu0 %v474, 32
    %v633 = vpop.permute.xlu0 %632
    %634 = vrot.lane.b32.xlu0 %v476, 32
    %v635 = vpop.permute.xlu0 %634
    %636 = vrot.lane.b32.xlu0 %v478, 32
    %v637 = vpop.permute.xlu0 %636
    %638 = vrot.lane.b32.xlu0 %v480, 32
    %v639 = vpop.permute.xlu0 %638
    %640 = vrot.lane.b32.xlu0 %v482, 32
    %v641 = vpop.permute.xlu0 %640
    %655 = vrot.lane.b32.xlu0 %v461, 64
    %v656 = vpop.permute.xlu0 %655
    %657 = vrot.lane.b32.xlu0 %v463, 64
    %v658 = vpop.permute.xlu0 %657
    %659 = vrot.lane.b32.xlu0 %v465, 64
    %v660 = vpop.permute.xlu0 %659
    %661 = vrot.lane.b32.xlu0 %v467, 64
    %v662 = vpop.permute.xlu0 %661
    %663 = vrot.lane.b32.xlu0 %v469, 64
    %v664 = vpop.permute.xlu0 %663
    %665 = vrot.lane.b32.xlu0 %v471, 64
    %v666 = vpop.permute.xlu0 %665
    %667 = vrot.lane.b32.xlu0 %v473, 64
    %v668 = vpop.permute.xlu0 %667
    %669 = vrot.lane.b32.xlu0 %v475, 64
    %v670 = vpop.permute.xlu0 %669
    %671 = vrot.lane.b32.xlu0 %v477, 64
    %v672 = vpop.permute.xlu0 %671
    %673 = vrot.lane.b32.xlu0 %v479, 64
    %v674 = vpop.permute.xlu0 %673
    %675 = vrot.lane.b32.xlu0 %v481, 64
    %v676 = vpop.permute.xlu0 %675
    %677 = vrot.lane.b32.xlu0 0.0, 64
    %v678 = vpop.permute.xlu0 %677
    %v691 = vsel %vm592, %v459, %v619
    %v692 = vsel %vm592, %v461, %v621
    %v693 = vsel %vm592, %v463, %v623
    %v694 = vsel %vm592, %v465, %v625
    %v695 = vsel %vm592, %v467, %v627
    %v696 = vsel %vm592, %v469, %v629
    %v697 = vsel %vm592, %v471, %v631
    %v698 = vsel %vm592, %v473, %v633
    %v699 = vsel %vm592, %v475, %v635
    %v700 = vsel %vm592, %v477, %v637
    %v701 = vsel %vm592, %v479, %v639
    %v702 = vsel %vm592, %v481, %v641
    %v703 = vsel %vm605, %v691, %v656
    %v704 = vsel %vm605, %v692, %v658
    %v705 = vsel %vm605, %v693, %v660
    %v706 = vsel %vm605, %v694, %v662
    %v707 = vsel %vm605, %v695, %v664
    %v708 = vsel %vm605, %v696, %v666
    %v709 = vsel %vm605, %v697, %v668
    %v710 = vsel %vm605, %v698, %v670
    %v711 = vsel %vm605, %v699, %v672
    %v712 = vsel %vm605, %v700, %v674
    %v713 = vsel %vm605, %v701, %v676
    %v714 = vsel %vm605, %v702, %v678
    %v716 = vperm.slane %v495, 0
    %vm718 = vcmask 785408
    %v720 = vsel %vm718, %v606, 0
    %v723 = vsel %vm718, %v607, 0
    %v726 = vsel %vm718, %v608, 0
    %v729 = vsel %vm718, %v609, 0
    %v732 = vsel %vm718, %v610, 0
    %v735 = vsel %vm718, %v611, 0
    %v738 = vsel %vm718, %v612, 0
    %v741 = vsel %vm718, %v613, 0
    %v744 = vsel %vm718, %v614, 0
    %v747 = vsel %vm718, %v615, 0
    %v750 = vsel %vm718, %v616, 0
    %v753 = vsel %vm718, %v617, 0
    %755 = vmatpush.msra.mxu0 0.0
    %756 = vmatpush.msra.mxu0 0.0
    %757 = vmatpush.msra.mxu0 0.0
    %758 = vmatpush.msra.mxu0 0.0
    %759 = vmatpush.msra.mxu0 %v494
    %760 = vmatpush.msra.mxu0 %v493
    %761 = vmatpush.msra.mxu0 %v492
    %762 = vmatpush.msra.mxu0 %v491
    %763 = vmatpush.msra.mxu0 %v490
    %764 = vmatpush.msra.mxu0 %v489
    %765 = vmatpush.msra.mxu0 %v488
    %766 = vmatpush.msra.mxu0 %v487
    %767 = vmatpush.msra.mxu0 %v486
    %768 = vmatpush.msra.mxu0 %v485
    %769 = vmatpush.msra.mxu0 %v484
    %770 = vmatpush.msra.mxu0 %v483
    %771 = vmatmul.f32.gmra.mxu0 %v720
    %v772 = vpop.f32.mrf.mxu0
    %v773 = vadd.f32 %v716, %v772
    %774 = vmatmul.f32.gmra.mxu0 %v723
    %v775 = vpop.f32.mrf.mxu0
    %v776 = vadd.f32 %v716, %v775
    %777 = vmatmul.f32.gmra.mxu0 %v726
    %v778 = vpop.f32.mrf.mxu0
    %v779 = vadd.f32 %v716, %v778
    %780 = vmatmul.f32.gmra.mxu0 %v729
    %v781 = vpop.f32.mrf.mxu0
    %v782 = vadd.f32 %v716, %v781
    %783 = vmatmul.f32.gmra.mxu0 %v732
    %v784 = vpop.f32.mrf.mxu0
    %v785 = vadd.f32 %v716, %v784
    %786 = vmatmul.f32.gmra.mxu0 %v735
    %v787 = vpop.f32.mrf.mxu0
    %v788 = vadd.f32 %v716, %v787
    %789 = vmatmul.f32.gmra.mxu0 %v738
    %v790 = vpop.f32.mrf.mxu0
    %v791 = vadd.f32 %v716, %v790
    %792 = vmatmul.f32.gmra.mxu0 %v741
    %v793 = vpop.f32.mrf.mxu0
    %v794 = vadd.f32 %v716, %v793
    %795 = vmatmul.f32.gmra.mxu0 %v744
    %v796 = vpop.f32.mrf.mxu0
    %v797 = vadd.f32 %v716, %v796
    %798 = vmatmul.f32.gmra.mxu0 %v747
    %v799 = vpop.f32.mrf.mxu0
    %v800 = vadd.f32 %v716, %v799
    %801 = vmatmul.f32.gmra.mxu0 %v750
    %v802 = vpop.f32.mrf.mxu0
    %v803 = vadd.f32 %v716, %v802
    %804 = vmatmul.f32.gmra.mxu0 %v753
    %v805 = vpop.f32.mrf.mxu0
    %v806 = vadd.f32 %v716, %v805
    %807 = vdwg.mxu0
    %v808 = vmax.f32 %v773, 0.0
    %v809 = vmax.f32 %v776, 0.0
    %v810 = vmax.f32 %v779, 0.0
    %v811 = vmax.f32 %v782, 0.0
    %v812 = vmax.f32 %v785, 0.0
    %v813 = vmax.f32 %v788, 0.0
    %v814 = vmax.f32 %v791, 0.0
    %v815 = vmax.f32 %v794, 0.0
    %v816 = vmax.f32 %v797, 0.0
    %v817 = vmax.f32 %v800, 0.0
    %v818 = vmax.f32 %v803, 0.0
    %v819 = vmax.f32 %v806, 0.0
    %v821 = vsel %vm718, %v703, 0
    %v824 = vsel %vm718, %v704, 0
    %v827 = vsel %vm718, %v705, 0
    %v830 = vsel %vm718, %v706, 0
    %v833 = vsel %vm718, %v707, 0
    %v836 = vsel %vm718, %v708, 0
    %v839 = vsel %vm718, %v709, 0
    %v842 = vsel %vm718, %v710, 0
    %v845 = vsel %vm718, %v711, 0
    %v848 = vsel %vm718, %v712, 0
    %v851 = vsel %vm718, %v713, 0
    %v854 = vsel %vm718, %v714, 0
    %856 = vmatpush.msra.mxu0 0.0
    %857 = vmatpush.msra.mxu0 0.0
    %858 = vmatpush.msra.mxu0 0.0
    %859 = vmatpush.msra.mxu0 0.0
    %860 = vmatpush.msra.mxu0 %v494
    %861 = vmatpush.msra.mxu0 %v493
    %862 = vmatpush.msra.mxu0 %v492
    %863 = vmatpush.msra.mxu0 %v491
    %864 = vmatpush.msra.mxu0 %v490
    %865 = vmatpush.msra.mxu0 %v489
    %866 = vmatpush.msra.mxu0 %v488
    %867 = vmatpush.msra.mxu0 %v487
    %868 = vmatpush.msra.mxu0 %v486
    %869 = vmatpush.msra.mxu0 %v485
    %870 = vmatpush.msra.mxu0 %v484
    %871 = vmatpush.msra.mxu0 %v483
    %872 = vmatmul.f32.gmra.mxu0 %v821
    %v873 = vpop.f32.mrf.mxu0
    %v874 = vadd.f32 %v716, %v873
    %875 = vmatmul.f32.gmra.mxu0 %v824
    %v876 = vpop.f32.mrf.mxu0
    %v877 = vadd.f32 %v716, %v876
    %878 = vmatmul.f32.gmra.mxu0 %v827
    %v879 = vpop.f32.mrf.mxu0
    %v880 = vadd.f32 %v716, %v879
    %881 = vmatmul.f32.gmra.mxu0 %v830
    %v882 = vpop.f32.mrf.mxu0
    %v883 = vadd.f32 %v716, %v882
    %884 = vmatmul.f32.gmra.mxu0 %v833
    %v885 = vpop.f32.mrf.mxu0
    %v886 = vadd.f32 %v716, %v885
    %887 = vmatmul.f32.gmra.mxu0 %v836
    %v888 = vpop.f32.mrf.mxu0
    %v889 = vadd.f32 %v716, %v888
    %890 = vmatmul.f32.gmra.mxu0 %v839
    %v891 = vpop.f32.mrf.mxu0
    %v892 = vadd.f32 %v716, %v891
    %893 = vmatmul.f32.gmra.mxu0 %v842
    %v894 = vpop.f32.mrf.mxu0
    %v895 = vadd.f32 %v716, %v894
    %896 = vmatmul.f32.gmra.mxu0 %v845
    %v897 = vpop.f32.mrf.mxu0
    %v898 = vadd.f32 %v716, %v897
    %899 = vmatmul.f32.gmra.mxu0 %v848
    %v900 = vpop.f32.mrf.mxu0
    %v901 = vadd.f32 %v716, %v900
    %902 = vmatmul.f32.gmra.mxu0 %v851
    %v903 = vpop.f32.mrf.mxu0
    %v904 = vadd.f32 %v716, %v903
    %905 = vmatmul.f32.gmra.mxu0 %v854
    %v906 = vpop.f32.mrf.mxu0
    %v907 = vadd.f32 %v716, %v906
    %908 = vdwg.mxu0
    %v909 = vmax.f32 %v874, 0.0
    %v910 = vmax.f32 %v877, 0.0
    %v911 = vmax.f32 %v880, 0.0
    %v912 = vmax.f32 %v883, 0.0
    %v913 = vmax.f32 %v886, 0.0
    %v914 = vmax.f32 %v889, 0.0
    %v915 = vmax.f32 %v892, 0.0
    %v916 = vmax.f32 %v895, 0.0
    %v917 = vmax.f32 %v898, 0.0
    %v918 = vmax.f32 %v901, 0.0
    %v919 = vmax.f32 %v904, 0.0
    %v920 = vmax.f32 %v907, 0.0
    %v921 = vmax.f32 %v808, %v909
    %v922 = vmax.f32 %v809, %v910
    %v923 = vmax.f32 %v810, %v911
    %v924 = vmax.f32 %v811, %v912
    %v925 = vmax.f32 %v812, %v913
    %v926 = vmax.f32 %v813, %v914
    %v927 = vmax.f32 %v814, %v915
    %v928 = vmax.f32 %v815, %v916
    %v929 = vmax.f32 %v816, %v917
    %v930 = vmax.f32 %v817, %v918
    %v931 = vmax.f32 %v818, %v919
    %v932 = vmax.f32 %v819, %v920
    %v933 = vld [vmem:[%s5] sm:$0xff]
    %v934 = vld [vmem:[%s5 + $0x8] sm:$0xff]
    %v935 = vld [vmem:[%s5 + $0x10] sm:$0xff]
    %v936 = vld [vmem:[%s5 + $0x18] sm:$0xff]
    %v937 = vld [vmem:[%s5 + $0x20] sm:$0xff]
    %v938 = vld [vmem:[%s5 + $0x28] sm:$0xff]
    %v939 = vld [vmem:[%s5 + $0x30] sm:$0xff]
    %v940 = vld [vmem:[%s5 + $0x38] sm:$0xff]
    %s941 = scalar_lea.vmem %s5, 64
    %v942 = vld [vmem:[%s941] sm:$0xff]
    %v943 = vld [vmem:[%s941 + $0x8] sm:$0xff]
    %v944 = vld [vmem:[%s941 + $0x10] sm:$0xff]
    %v945 = vld [vmem:[%s941 + $0x18] sm:$0xff]
    %v946 = vld [vmem:[%s941 + $0x20] sm:$0xff]
    %v947 = vld [vmem:[%s941 + $0x28] sm:$0xff]
    %v948 = vld [vmem:[%s941 + $0x30] sm:$0xff]
    %v949 = vld [vmem:[%s941 + $0x38] sm:$0xff]
    %v951 = vsel %vm605, %v922, 0
    %953 = vmatpush.msra.mxu0 0.0
    %954 = vmatpush.msra.mxu0 0.0
    %955 = vmatpush.msra.mxu0 0.0
    %956 = vmatpush.msra.mxu0 0.0
    %957 = vmatpush.msra.mxu0 0.0
    %958 = vmatpush.msra.mxu0 0.0
    %959 = vmatpush.msra.mxu0 0.0
    %960 = vmatpush.msra.mxu0 0.0
    %961 = vmatpush.msra.mxu0 %v949
    %962 = vmatpush.msra.mxu0 %v948
    %963 = vmatpush.msra.mxu0 %v947
    %964 = vmatpush.msra.mxu0 %v946
    %965 = vmatpush.msra.mxu0 %v945
    %966 = vmatpush.msra.mxu0 %v944
    %967 = vmatpush.msra.mxu0 %v943
    %968 = vmatpush.msra.mxu0 %v942
    %969 = vmatmul.f32.gmra.mxu0 %v951
    %v970 = vpop.f32.mrf.mxu0
    %v971 = vadd.f32 0.0, %v970
    %972 = vdwg.mxu0
    %v974 = vsel %vm605, %v921, 0
    %976 = vmatpush.msra.mxu0 0.0
    %977 = vmatpush.msra.mxu0 0.0
    %978 = vmatpush.msra.mxu0 0.0
    %979 = vmatpush.msra.mxu0 0.0
    %980 = vmatpush.msra.mxu0 0.0
    %981 = vmatpush.msra.mxu0 0.0
    %982 = vmatpush.msra.mxu0 0.0
    %983 = vmatpush.msra.mxu0 0.0
    %984 = vmatpush.msra.mxu0 %v940
    %985 = vmatpush.msra.mxu0 %v939
    %986 = vmatpush.msra.mxu0 %v938
    %987 = vmatpush.msra.mxu0 %v937
    %988 = vmatpush.msra.mxu0 %v936
    %989 = vmatpush.msra.mxu0 %v935
    %990 = vmatpush.msra.mxu0 %v934
    %991 = vmatpush.msra.mxu0 %v933
    %992 = vmatmul.f32.gmra.mxu0 %v974
    %v993 = vpop.f32.mrf.mxu0
    %v994 = vadd.f32 %v971, %v993
    %995 = vdwg.mxu0
    %s996 = scalar_lea.vmem %s5, 128
    %v997 = vld [vmem:[%s996] sm:$0xff]
    %v998 = vld [vmem:[%s996 + $0x8] sm:$0xff]
    %v999 = vld [vmem:[%s996 + $0x10] sm:$0xff]
    %v1000 = vld [vmem:[%s996 + $0x18] sm:$0xff]
    %v1001 = vld [vmem:[%s996 + $0x20] sm:$0xff]
    %v1002 = vld [vmem:[%s996 + $0x28] sm:$0xff]
    %v1003 = vld [vmem:[%s996 + $0x30] sm:$0xff]
    %v1004 = vld [vmem:[%s996 + $0x38] sm:$0xff]
    %v1006 = vsel %vm605, %v923, 0
    %1008 = vmatpush.msra.mxu0 0.0
    %1009 = vmatpush.msra.mxu0 0.0
    %1010 = vmatpush.msra.mxu0 0.0
    %1011 = vmatpush.msra.mxu0 0.0
    %1012 = vmatpush.msra.mxu0 0.0
    %1013 = vmatpush.msra.mxu0 0.0
    %1014 = vmatpush.msra.mxu0 0.0
    %1015 = vmatpush.msra.mxu0 0.0
    %1016 = vmatpush.msra.mxu0 %v1004
    %1017 = vmatpush.msra.mxu0 %v1003
    %1018 = vmatpush.msra.mxu0 %v1002
    %1019 = vmatpush.msra.mxu0 %v1001
    %1020 = vmatpush.msra.mxu0 %v1000
    %1021 = vmatpush.msra.mxu0 %v999
    %1022 = vmatpush.msra.mxu0 %v998
    %1023 = vmatpush.msra.mxu0 %v997
    %1024 = vmatmul.f32.gmra.mxu0 %v1006
    %v1025 = vpop.f32.mrf.mxu0
    %v1026 = vadd.f32 0.0, %v1025
    %1027 = vdwg.mxu0
    %v1028 = vadd.f32 %v994, %v1026
    %s1029 = scalar_lea.vmem %s5, 192
    %v1030 = vld [vmem:[%s1029] sm:$0xff]
    %v1031 = vld [vmem:[%s1029 + $0x8] sm:$0xff]
    %v1032 = vld [vmem:[%s1029 + $0x10] sm:$0xff]
    %v1033 = vld [vmem:[%s1029 + $0x18] sm:$0xff]
    %v1034 = vld [vmem:[%s1029 + $0x20] sm:$0xff]
    %v1035 = vld [vmem:[%s1029 + $0x28] sm:$0xff]
    %v1036 = vld [vmem:[%s1029 + $0x30] sm:$0xff]
    %v1037 = vld [vmem:[%s1029 + $0x38] sm:$0xff]
    %v1039 = vsel %vm605, %v924, 0
    %1041 = vmatpush.msra.mxu0 0.0
    %1042 = vmatpush.msra.mxu0 0.0
    %1043 = vmatpush.msra.mxu0 0.0
    %1044 = vmatpush.msra.mxu0 0.0
    %1045 = vmatpush.msra.mxu0 0.0
    %1046 = vmatpush.msra.mxu0 0.0
    %1047 = vmatpush.msra.mxu0 0.0
    %1048 = vmatpush.msra.mxu0 0.0
    %1049 = vmatpush.msra.mxu0 %v1037
    %1050 = vmatpush.msra.mxu0 %v1036
    %1051 = vmatpush.msra.mxu0 %v1035
    %1052 = vmatpush.msra.mxu0 %v1034
    %1053 = vmatpush.msra.mxu0 %v1033
    %1054 = vmatpush.msra.mxu0 %v1032
    %1055 = vmatpush.msra.mxu0 %v1031
    %1056 = vmatpush.msra.mxu0 %v1030
    %1057 = vmatmul.f32.gmra.mxu0 %v1039
    %v1058 = vpop.f32.mrf.mxu0
    %v1059 = vadd.f32 0.0, %v1058
    %1060 = vdwg.mxu0
    %v1061 = vadd.f32 %v1028, %v1059
    %s1062 = scalar_lea.vmem %s5, 256
    %v1063 = vld [vmem:[%s1062] sm:$0xff]
    %v1064 = vld [vmem:[%s1062 + $0x8] sm:$0xff]
    %v1065 = vld [vmem:[%s1062 + $0x10] sm:$0xff]
    %v1066 = vld [vmem:[%s1062 + $0x18] sm:$0xff]
    %v1067 = vld [vmem:[%s1062 + $0x20] sm:$0xff]
    %v1068 = vld [vmem:[%s1062 + $0x28] sm:$0xff]
    %v1069 = vld [vmem:[%s1062 + $0x30] sm:$0xff]
    %v1070 = vld [vmem:[%s1062 + $0x38] sm:$0xff]
    %v1072 = vsel %vm605, %v925, 0
    %1074 = vmatpush.msra.mxu0 0.0
    %1075 = vmatpush.msra.mxu0 0.0
    %1076 = vmatpush.msra.mxu0 0.0
    %1077 = vmatpush.msra.mxu0 0.0
    %1078 = vmatpush.msra.mxu0 0.0
    %1079 = vmatpush.msra.mxu0 0.0
    %1080 = vmatpush.msra.mxu0 0.0
    %1081 = vmatpush.msra.mxu0 0.0
    %1082 = vmatpush.msra.mxu0 %v1070
    %1083 = vmatpush.msra.mxu0 %v1069
    %1084 = vmatpush.msra.mxu0 %v1068
    %1085 = vmatpush.msra.mxu0 %v1067
    %1086 = vmatpush.msra.mxu0 %v1066
    %1087 = vmatpush.msra.mxu0 %v1065
    %1088 = vmatpush.msra.mxu0 %v1064
    %1089 = vmatpush.msra.mxu0 %v1063
    %1090 = vmatmul.f32.gmra.mxu0 %v1072
    %v1091 = vpop.f32.mrf.mxu0
    %v1092 = vadd.f32 0.0, %v1091
    %1093 = vdwg.mxu0
    %v1094 = vadd.f32 %v1061, %v1092
    %s1095 = scalar_lea.vmem %s5, 320
    %v1096 = vld [vmem:[%s1095] sm:$0xff]
    %v1097 = vld [vmem:[%s1095 + $0x8] sm:$0xff]
    %v1098 = vld [vmem:[%s1095 + $0x10] sm:$0xff]
    %v1099 = vld [vmem:[%s1095 + $0x18] sm:$0xff]
    %v1100 = vld [vmem:[%s1095 + $0x20] sm:$0xff]
    %v1101 = vld [vmem:[%s1095 + $0x28] sm:$0xff]
    %v1102 = vld [vmem:[%s1095 + $0x30] sm:$0xff]
    %v1103 = vld [vmem:[%s1095 + $0x38] sm:$0xff]
    %v1105 = vsel %vm605, %v926, 0
    %1107 = vmatpush.msra.mxu0 0.0
    %1108 = vmatpush.msra.mxu0 0.0
    %1109 = vmatpush.msra.mxu0 0.0
    %1110 = vmatpush.msra.mxu0 0.0
    %1111 = vmatpush.msra.mxu0 0.0
    %1112 = vmatpush.msra.mxu0 0.0
    %1113 = vmatpush.msra.mxu0 0.0
    %1114 = vmatpush.msra.mxu0 0.0
    %1115 = vmatpush.msra.mxu0 %v1103
    %1116 = vmatpush.msra.mxu0 %v1102
    %1117 = vmatpush.msra.mxu0 %v1101
    %1118 = vmatpush.msra.mxu0 %v1100
    %1119 = vmatpush.msra.mxu0 %v1099
    %1120 = vmatpush.msra.mxu0 %v1098
    %1121 = vmatpush.msra.mxu0 %v1097
    %1122 = vmatpush.msra.mxu0 %v1096
    %1123 = vmatmul.f32.gmra.mxu0 %v1105
    %v1124 = vpop.f32.mrf.mxu0
    %v1125 = vadd.f32 0.0, %v1124
    %1126 = vdwg.mxu0
    %v1127 = vadd.f32 %v1094, %v1125
    %s1128 = scalar_lea.vmem %s5, 384
    %v1129 = vld [vmem:[%s1128] sm:$0xff]
    %v1130 = vld [vmem:[%s1128 + $0x8] sm:$0xff]
    %v1131 = vld [vmem:[%s1128 + $0x10] sm:$0xff]
    %v1132 = vld [vmem:[%s1128 + $0x18] sm:$0xff]
    %v1133 = vld [vmem:[%s1128 + $0x20] sm:$0xff]
    %v1134 = vld [vmem:[%s1128 + $0x28] sm:$0xff]
    %v1135 = vld [vmem:[%s1128 + $0x30] sm:$0xff]
    %v1136 = vld [vmem:[%s1128 + $0x38] sm:$0xff]
    %v1138 = vsel %vm605, %v927, 0
    %1140 = vmatpush.msra.mxu0 0.0
    %1141 = vmatpush.msra.mxu0 0.0
    %1142 = vmatpush.msra.mxu0 0.0
    %1143 = vmatpush.msra.mxu0 0.0
    %1144 = vmatpush.msra.mxu0 0.0
    %1145 = vmatpush.msra.mxu0 0.0
    %1146 = vmatpush.msra.mxu0 0.0
    %1147 = vmatpush.msra.mxu0 0.0
    %1148 = vmatpush.msra.mxu0 %v1136
    %1149 = vmatpush.msra.mxu0 %v1135
    %1150 = vmatpush.msra.mxu0 %v1134
    %1151 = vmatpush.msra.mxu0 %v1133
    %1152 = vmatpush.msra.mxu0 %v1132
    %1153 = vmatpush.msra.mxu0 %v1131
    %1154 = vmatpush.msra.mxu0 %v1130
    %1155 = vmatpush.msra.mxu0 %v1129
    %1156 = vmatmul.f32.gmra.mxu0 %v1138
    %v1157 = vpop.f32.mrf.mxu0
    %v1158 = vadd.f32 0.0, %v1157
    %1159 = vdwg.mxu0
    %v1160 = vadd.f32 %v1127, %v1158
    %s1161 = scalar_lea.vmem %s5, 448
    %v1162 = vld [vmem:[%s1161] sm:$0xff]
    %v1163 = vld [vmem:[%s1161 + $0x8] sm:$0xff]
    %v1164 = vld [vmem:[%s1161 + $0x10] sm:$0xff]
    %v1165 = vld [vmem:[%s1161 + $0x18] sm:$0xff]
    %v1166 = vld [vmem:[%s1161 + $0x20] sm:$0xff]
    %v1167 = vld [vmem:[%s1161 + $0x28] sm:$0xff]
    %v1168 = vld [vmem:[%s1161 + $0x30] sm:$0xff]
    %v1169 = vld [vmem:[%s1161 + $0x38] sm:$0xff]
    %v1171 = vsel %vm605, %v928, 0
    %1173 = vmatpush.msra.mxu0 0.0
    %1174 = vmatpush.msra.mxu0 0.0
    %1175 = vmatpush.msra.mxu0 0.0
    %1176 = vmatpush.msra.mxu0 0.0
    %1177 = vmatpush.msra.mxu0 0.0
    %1178 = vmatpush.msra.mxu0 0.0
    %1179 = vmatpush.msra.mxu0 0.0
    %1180 = vmatpush.msra.mxu0 0.0
    %1181 = vmatpush.msra.mxu0 %v1169
    %1182 = vmatpush.msra.mxu0 %v1168
    %1183 = vmatpush.msra.mxu0 %v1167
    %1184 = vmatpush.msra.mxu0 %v1166
    %1185 = vmatpush.msra.mxu0 %v1165
    %1186 = vmatpush.msra.mxu0 %v1164
    %1187 = vmatpush.msra.mxu0 %v1163
    %1188 = vmatpush.msra.mxu0 %v1162
    %1189 = vmatmul.f32.gmra.mxu0 %v1171
    %v1190 = vpop.f32.mrf.mxu0
    %v1191 = vadd.f32 0.0, %v1190
    %1192 = vdwg.mxu0
    %v1193 = vadd.f32 %v1160, %v1191
    %s1194 = scalar_lea.vmem %s5, 512
    %v1195 = vld [vmem:[%s1194] sm:$0xff]
    %v1196 = vld [vmem:[%s1194 + $0x8] sm:$0xff]
    %v1197 = vld [vmem:[%s1194 + $0x10] sm:$0xff]
    %v1198 = vld [vmem:[%s1194 + $0x18] sm:$0xff]
    %v1199 = vld [vmem:[%s1194 + $0x20] sm:$0xff]
    %v1200 = vld [vmem:[%s1194 + $0x28] sm:$0xff]
    %v1201 = vld [vmem:[%s1194 + $0x30] sm:$0xff]
    %v1202 = vld [vmem:[%s1194 + $0x38] sm:$0xff]
    %v1204 = vsel %vm605, %v929, 0
    %1206 = vmatpush.msra.mxu0 0.0
    %1207 = vmatpush.msra.mxu0 0.0
    %1208 = vmatpush.msra.mxu0 0.0
    %1209 = vmatpush.msra.mxu0 0.0
    %1210 = vmatpush.msra.mxu0 0.0
    %1211 = vmatpush.msra.mxu0 0.0
    %1212 = vmatpush.msra.mxu0 0.0
    %1213 = vmatpush.msra.mxu0 0.0
    %1214 = vmatpush.msra.mxu0 %v1202
    %1215 = vmatpush.msra.mxu0 %v1201
    %1216 = vmatpush.msra.mxu0 %v1200
    %1217 = vmatpush.msra.mxu0 %v1199
    %1218 = vmatpush.msra.mxu0 %v1198
    %1219 = vmatpush.msra.mxu0 %v1197
    %1220 = vmatpush.msra.mxu0 %v1196
    %1221 = vmatpush.msra.mxu0 %v1195
    %1222 = vmatmul.f32.gmra.mxu0 %v1204
    %v1223 = vpop.f32.mrf.mxu0
    %v1224 = vadd.f32 0.0, %v1223
    %1225 = vdwg.mxu0
    %v1226 = vadd.f32 %v1193, %v1224
    %s1227 = scalar_lea.vmem %s5, 576
    %v1228 = vld [vmem:[%s1227] sm:$0xff]
    %v1229 = vld [vmem:[%s1227 + $0x8] sm:$0xff]
    %v1230 = vld [vmem:[%s1227 + $0x10] sm:$0xff]
    %v1231 = vld [vmem:[%s1227 + $0x18] sm:$0xff]
    %v1232 = vld [vmem:[%s1227 + $0x20] sm:$0xff]
    %v1233 = vld [vmem:[%s1227 + $0x28] sm:$0xff]
    %v1234 = vld [vmem:[%s1227 + $0x30] sm:$0xff]
    %v1235 = vld [vmem:[%s1227 + $0x38] sm:$0xff]
    %v1237 = vsel %vm605, %v930, 0
    %1239 = vmatpush.msra.mxu0 0.0
    %1240 = vmatpush.msra.mxu0 0.0
    %1241 = vmatpush.msra.mxu0 0.0
    %1242 = vmatpush.msra.mxu0 0.0
    %1243 = vmatpush.msra.mxu0 0.0
    %1244 = vmatpush.msra.mxu0 0.0
    %1245 = vmatpush.msra.mxu0 0.0
    %1246 = vmatpush.msra.mxu0 0.0
    %1247 = vmatpush.msra.mxu0 %v1235
    %1248 = vmatpush.msra.mxu0 %v1234
    %1249 = vmatpush.msra.mxu0 %v1233
    %1250 = vmatpush.msra.mxu0 %v1232
    %1251 = vmatpush.msra.mxu0 %v1231
    %1252 = vmatpush.msra.mxu0 %v1230
    %1253 = vmatpush.msra.mxu0 %v1229
    %1254 = vmatpush.msra.mxu0 %v1228
    %1255 = vmatmul.f32.gmra.mxu0 %v1237
    %v1256 = vpop.f32.mrf.mxu0
    %v1257 = vadd.f32 0.0, %v1256
    %1258 = vdwg.mxu0
    %v1259 = vadd.f32 %v1226, %v1257
    %s1260 = scalar_lea.vmem %s5, 640
    %v1261 = vld [vmem:[%s1260] sm:$0xff]
    %v1262 = vld [vmem:[%s1260 + $0x8] sm:$0xff]
    %v1263 = vld [vmem:[%s1260 + $0x10] sm:$0xff]
    %v1264 = vld [vmem:[%s1260 + $0x18] sm:$0xff]
    %v1265 = vld [vmem:[%s1260 + $0x20] sm:$0xff]
    %v1266 = vld [vmem:[%s1260 + $0x28] sm:$0xff]
    %v1267 = vld [vmem:[%s1260 + $0x30] sm:$0xff]
    %v1268 = vld [vmem:[%s1260 + $0x38] sm:$0xff]
    %v1270 = vsel %vm605, %v931, 0
    %1272 = vmatpush.msra.mxu0 0.0
    %1273 = vmatpush.msra.mxu0 0.0
    %1274 = vmatpush.msra.mxu0 0.0
    %1275 = vmatpush.msra.mxu0 0.0
    %1276 = vmatpush.msra.mxu0 0.0
    %1277 = vmatpush.msra.mxu0 0.0
    %1278 = vmatpush.msra.mxu0 0.0
    %1279 = vmatpush.msra.mxu0 0.0
    %1280 = vmatpush.msra.mxu0 %v1268
    %1281 = vmatpush.msra.mxu0 %v1267
    %1282 = vmatpush.msra.mxu0 %v1266
    %1283 = vmatpush.msra.mxu0 %v1265
    %1284 = vmatpush.msra.mxu0 %v1264
    %1285 = vmatpush.msra.mxu0 %v1263
    %1286 = vmatpush.msra.mxu0 %v1262
    %1287 = vmatpush.msra.mxu0 %v1261
    %1288 = vmatmul.f32.gmra.mxu0 %v1270
    %v1289 = vpop.f32.mrf.mxu0
    %v1290 = vadd.f32 0.0, %v1289
    %1291 = vdwg.mxu0
    %v1292 = vadd.f32 %v1259, %v1290
    %s1293 = scalar_lea.vmem %s5, 704
    %v1294 = vld [vmem:[%s1293] sm:$0xff]
    %v1295 = vld [vmem:[%s1293 + $0x8] sm:$0xff]
    %v1296 = vld [vmem:[%s1293 + $0x10] sm:$0xff]
    %v1297 = vld [vmem:[%s1293 + $0x18] sm:$0xff]
    %v1298 = vld [vmem:[%s1293 + $0x20] sm:$0xff]
    %v1299 = vld [vmem:[%s1293 + $0x28] sm:$0xff]
    %v1300 = vld [vmem:[%s1293 + $0x30] sm:$0xff]
    %v1301 = vld [vmem:[%s1293 + $0x38] sm:$0xff]
    %v1303 = vsel %vm605, %v932, 0
    %1305 = vmatpush.msra.mxu0 0.0
    %1306 = vmatpush.msra.mxu0 0.0
    %1307 = vmatpush.msra.mxu0 0.0
    %1308 = vmatpush.msra.mxu0 0.0
    %1309 = vmatpush.msra.mxu0 0.0
    %1310 = vmatpush.msra.mxu0 0.0
    %1311 = vmatpush.msra.mxu0 0.0
    %1312 = vmatpush.msra.mxu0 0.0
    %1313 = vmatpush.msra.mxu0 %v1301
    %1314 = vmatpush.msra.mxu0 %v1300
    %1315 = vmatpush.msra.mxu0 %v1299
    %1316 = vmatpush.msra.mxu0 %v1298
    %1317 = vmatpush.msra.mxu0 %v1297
    %1318 = vmatpush.msra.mxu0 %v1296
    %1319 = vmatpush.msra.mxu0 %v1295
    %1320 = vmatpush.msra.mxu0 %v1294
    %1321 = vmatmul.f32.gmra.mxu0 %v1303
    %v1322 = vpop.f32.mrf.mxu0
    %v1323 = vadd.f32 0.0, %v1322
    %1324 = vdwg.mxu0
    %v1325 = vadd.f32 %v1292, %v1323
    %v1326 = vld [vmem:[%s6] sm:$0x1]
    %v1328 = vperm.slane %v1326, 0
    %v1330 = vadd.f32 %v1325, %v1328
    %1331 = vst [vmem:[#allocation2] sm:$0xff] %v1330
    // Predicated region
    $region30: #{tpu_custom_call.1} parent=1 // pred_check
      _
    $region31: #{tpu_custom_call.1} parent=1 // pred_check_branch
      %1333 = sbr.rel (0) target = $region33
    $region32: #{tpu_custom_call.1} parent=1 // pred_region
      %1335 = vsyncadd [#allocation3], 0
      %s1337 = sshll.u32 [#allocation2], 4
      %s1338 = int_to_ptr.vmem [resolvable:$true] %s1337
      %s1339 = sshll.u32 %s7, 4
      %s1340 = int_to_ptr.hbm [resolvable:$true] %s1339
      %1342 = dma.vmem_to_hbm [thread:$0]  %s1338, 128, %s1340, [#allocation3]
    $region33: #{tpu_custom_call.1} parent=1 // pred_fallthru
      _
    // Predicated region
    $region34: #{tpu_custom_call.1} parent=1 // pred_check
      _
    $region35: #{tpu_custom_call.1} parent=1 // pred_check_branch
      %1344 = sbr.rel (0) target = $region37
    $region36: #{tpu_custom_call.1} parent=1 // pred_region
      %1346 = dma.done [#allocation3], 128
    $region37: #{tpu_custom_call.1} parent=1 // pred_fallthru
      _
    %1347 = vsyncpa [#allocation3], 1

</llo_original>
